<compile_context>
chip_gen: v5e
topology: v5e:2x2
jax: 0.10.0
libtpu: 0.0.40
codegen_flags: <defaults>
</compile_context>

<pallas_src>
import functools

import jax
import jax.numpy as jnp
from jax.experimental import pallas as pl
from jax.experimental.pallas import tpu as pltpu

NEG_SLOPE = 0.01   # PyTorch LeakyReLU default negative slope
OUT_PAD = 128      # lane-dense padded width for the 2-class output
ROW_GRAN = 16      # sublane granularity safe for both f32 and packed-bf16 tiles


def _round_up(n, m):
    return ((n + m - 1) // m) * m


def _leaky_relu(z):
    # max(z, a*z) == leaky_relu for 0 < a < 1: one vmul + one vmax.
    return jnp.maximum(z, NEG_SLOPE * z)


def _has_bf16_vpu():
    """bf16 VALU exists on v6e/v7x; v5e and older keep the f32 epilogue."""
    try:
        kind = jax.devices()[0].device_kind.lower()
    except Exception:
        return True
    for tag in ("v2", "v3", "v4", "v5"):
        if tag in kind:
            return False
    return True


def pclass_mlp_kernel(x_ref,
                      w1_ref, b1_ref, w2_ref, b2_ref, w3_ref, b3_ref,
                      w4_ref, b4_ref, w5_ref, b5_ref, w6_ref, b6_ref,
                      o_ref):
    """One batch tile of the fused 6-layer MLP (Dropout = eval-mode identity).

    MXU matmuls accumulate in f32; the bias-add / LeakyReLU epilogue runs in
    the dtype the biases were prepared in (bf16 on v6e/v7x, f32 on v5e).
    """
    def layer(h_bf16, w_ref, b_ref, activate):
        acc = jnp.dot(h_bf16, w_ref[...], preferred_element_type=jnp.float32)
        z = acc.astype(b_ref.dtype) + b_ref[...]
        if activate:
            z = _leaky_relu(z)
        return z

    h = x_ref[...].astype(jnp.bfloat16)
    h = layer(h, w1_ref, b1_ref, True).astype(jnp.bfloat16)   # l1 -> d1 -> a1
    h = layer(h, w2_ref, b2_ref, True).astype(jnp.bfloat16)   # l4 -> d2 -> a4
    h = layer(h, w3_ref, b3_ref, True).astype(jnp.bfloat16)   # l5 -> a5 -> d3
    h = layer(h, w4_ref, b4_ref, True).astype(jnp.bfloat16)   # l6 -> a6 -> d4
    h = layer(h, w5_ref, b5_ref, True).astype(jnp.bfloat16)   # l7 -> a7 -> d5
    o_ref[...] = layer(h, w6_ref, b6_ref, False).astype(o_ref.dtype)   # l8 (padded)


def prepare_kernel_params(params, out_pad=OUT_PAD, bf16_epilogue=None):
    """One-time conversion to kernel layout (do NOT call per forward):
    bf16 weights, row-biases in the epilogue dtype, last layer padded to a
    lane-dense slab."""
    if bf16_epilogue is None:
        bf16_epilogue = _has_bf16_vpu()
    ep_dtype = jnp.bfloat16 if bf16_epilogue else jnp.float32

    (w1, b1), (w2, b2), (w3, b3), (w4, b4), (w5, b5), (w6, b6) = params
    H, n_out = w6.shape
    w6p = jnp.zeros((H, out_pad), jnp.float32).at[:, :n_out].set(w6)
    b6p = jnp.zeros((1, out_pad), jnp.float32).at[:, :n_out].set(b6.reshape(1, -1))

    kp = []
    for w, b in ((w1, b1), (w2, b2), (w3, b3), (w4, b4), (w5, b5)):
        kp.append((w.astype(jnp.bfloat16), b.reshape(1, -1).astype(ep_dtype)))
    kp.append((w6p.astype(jnp.bfloat16), b6p.astype(ep_dtype)))
    return kp


@functools.partial(jax.jit, static_argnames=("batch_tile",))
def pclass_forward(x, kernel_params, *, batch_tile=512):
    """x: (B, time*state) float32.  kernel_params from prepare_kernel_params.
    Returns logits (B, 2) float32."""
    B, in_dim = x.shape

    # --- batch-tile selection -------------------------------------------------
    bt = max(ROW_GRAN, (int(batch_tile) // ROW_GRAN) * ROW_GRAN)
    TB = min(bt, _round_up(B, ROW_GRAN))
    # Keep >= 2 grid steps whenever the batch allows so both v7x TensorCores
    # get work (the extra step costs ~0.35us on single-TC chips — negligible).
    if B >= 2 * ROW_GRAN:
        TB = min(TB, _round_up((B + 1) // 2, ROW_GRAN))
    B_pad = _round_up(B, TB)
    if B_pad != B:
        x = jnp.pad(x, ((0, B_pad - B), (0, 0)))

    grid = (B_pad // TB,)

    def resident(shape):
        # Constant block index every grid step -> stays VMEM-resident.
        # TODO(synk): pipeline_mode=pl.Buffered(1) would drop the unused second
        # weight buffer; skipped for maximum compile portability.
        return pl.BlockSpec(shape, lambda i: tuple(0 for _ in shape))

    in_specs = [pl.BlockSpec((TB, in_dim), lambda i: (i, 0))]
    operands = [x]
    flops = 0
    param_bytes = 0
    for w, b in kernel_params:
        in_specs += [resident(w.shape), resident(b.shape)]
        operands += [w, b]
        flops += 2 * B_pad * w.shape[0] * w.shape[1]
        param_bytes += w.size * w.dtype.itemsize + b.size * b.dtype.itemsize

    bytes_accessed = (B_pad * in_dim * x.dtype.itemsize
                      + param_bytes
                      + B_pad * OUT_PAD * 2)   # bf16 output slab

    out = pl.pallas_call(
        pclass_mlp_kernel,
        out_shape=jax.ShapeDtypeStruct((B_pad, OUT_PAD), jnp.bfloat16),
        grid=grid,
        in_specs=in_specs,
        out_specs=pl.BlockSpec((TB, OUT_PAD), lambda i: (i, 0)),
        compiler_params=pltpu.CompilerParams(
            dimension_semantics=("parallel",),   # batch tiles shard across v7x's 2 TCs
            vmem_limit_bytes=32 << 20,           # headroom for large batch tiles
        ),
        cost_estimate=pl.CostEstimate(
            flops=int(flops), transcendentals=0,
            bytes_accessed=int(bytes_accessed)),
    )(*operands)

    return out[:B, :2].astype(jnp.float32)


# ----------------------------- reference / init ------------------------------

def init_linear(key, fan_in, fan_out):
    """PyTorch-style Linear init: U(-1/sqrt(fan_in), 1/sqrt(fan_in))."""
    kw, kb = jax.random.split(key)
    bound = 1.0 / jnp.sqrt(jnp.float32(fan_in))
    w = jax.random.uniform(kw, (fan_in, fan_out), jnp.float32, -bound, bound)
    b = jax.random.uniform(kb, (fan_out,), jnp.float32, -bound, bound)
    return w, b


def init_pclass_params(key, in_dim, layer_size):
    dims = [(in_dim, layer_size)] + [(layer_size, layer_size)] * 4 + [(layer_size, 2)]
    keys = jax.random.split(key, len(dims))
    return [init_linear(k, fi, fo) for k, (fi, fo) in zip(keys, dims)]


def pclass_reference(x, params, *, bf16_epilogue, bf16_output=True):
    """Plain-JAX reference using the same dtype recipe as the kernel."""
    ep = jnp.bfloat16 if bf16_epilogue else jnp.float32
    h = x.astype(jnp.bfloat16)
    out = None
    n = len(params)
    for i, (w, b) in enumerate(params):
        acc = jnp.dot(h, w.astype(jnp.bfloat16), preferred_element_type=jnp.float32)
        z = acc.astype(ep) + b.reshape(1, -1).astype(ep)
        if i < n - 1:
            h = _leaky_relu(z).astype(jnp.bfloat16)
        else:
            out = z
    if bf16_output:
        out = out.astype(jnp.bfloat16)
    return out.astype(jnp.float32)


def pclass_reference_f32(x, params):
    """Full-precision reference (matches PyTorch eval-mode forward)."""
    h = x
    for i, (w, b) in enumerate(params):
        h = h @ w + b
        if i < len(params) - 1:
            h = _leaky_relu(h)
    return h


if __name__ == "__main__":
    # Shapes consistent with Pclass(layer_size, max_time, state_size).
    layer_size = 128
    max_time = 8
    state_size = 4
    in_dim = max_time * state_size   # 32
    batch = 256                      # exercises the 2-step parallel batch grid

    key = jax.random.PRNGKey(0)
    k_params, k_x = jax.random.split(key)

    params = init_pclass_params(k_params, in_dim, layer_size)
    kernel_params = prepare_kernel_params(params)   # one-time padding / dtype prep
    bf16_ep = kernel_params[0][1].dtype == jnp.bfloat16

    x = jax.random.normal(k_x, (batch, in_dim), jnp.float32)

    logits = jax.block_until_ready(pclass_forward(x, kernel_params))
    assert logits.shape == (batch, 2), logits.shape

    ref = pclass_reference(x, params, bf16_epilogue=bf16_ep)
    err = float(jnp.max(jnp.abs(logits - ref)))
    assert jnp.allclose(logits, ref, atol=1e-2, rtol=1e-2), err

    ref32 = pclass_reference_f32(x, params)
    err32 = float(jnp.max(jnp.abs(logits - ref32)))
    assert jnp.allclose(logits, ref32, atol=5e-2, rtol=5e-2), err32

    # Small (sub-tile) and odd-size (padded) batch paths.
    for nb in (8, 13):
        lg = jax.block_until_ready(pclass_forward(x[:nb], kernel_params))
        assert lg.shape == (nb, 2), lg.shape
        assert jnp.allclose(lg, ref[:nb], atol=1e-2, rtol=1e-2)

    print("KERNEL_OK")
</pallas_src>

<mosaic_0001>
module attributes {stable_mosaic.version = 11 : i64} {
  func.func @pclass_mlp_kernel(%arg0: i32, %arg1: memref<128x32xf32, #tpu.memory_space<vmem>>, %arg2: memref<32x128xbf16, #tpu.memory_space<vmem>>, %arg3: memref<1x128xbf16, #tpu.memory_space<vmem>>, %arg4: memref<128x128xbf16, #tpu.memory_space<vmem>>, %arg5: memref<1x128xbf16, #tpu.memory_space<vmem>>, %arg6: memref<128x128xbf16, #tpu.memory_space<vmem>>, %arg7: memref<1x128xbf16, #tpu.memory_space<vmem>>, %arg8: memref<128x128xbf16, #tpu.memory_space<vmem>>, %arg9: memref<1x128xbf16, #tpu.memory_space<vmem>>, %arg10: memref<128x128xbf16, #tpu.memory_space<vmem>>, %arg11: memref<1x128xbf16, #tpu.memory_space<vmem>>, %arg12: memref<128x128xbf16, #tpu.memory_space<vmem>>, %arg13: memref<1x128xbf16, #tpu.memory_space<vmem>>, %arg14: memref<128x128xbf16, #tpu.memory_space<vmem>>) attributes {dimension_semantics = [#tpu.dimension_semantics<parallel>], iteration_bounds = array<i64: 2>, scalar_prefetch = 0 : i64, scratch_operands = 0 : i64, tpu.core_type = #tpu.core_type<tc>, window_params = [{transform_indices = @transform_0, window_bounds = array<i64: 128, 32>}, {pipeline_mode = #tpu.pipeline_mode<synchronous>, transform_indices = @transform_1, window_bounds = array<i64: 32, 128>}, {pipeline_mode = #tpu.pipeline_mode<synchronous>, transform_indices = @transform_2, window_bounds = array<i64: 1, 128>}, {pipeline_mode = #tpu.pipeline_mode<synchronous>, transform_indices = @transform_3, window_bounds = array<i64: 128, 128>}, {pipeline_mode = #tpu.pipeline_mode<synchronous>, transform_indices = @transform_4, window_bounds = array<i64: 1, 128>}, {pipeline_mode = #tpu.pipeline_mode<synchronous>, transform_indices = @transform_5, window_bounds = array<i64: 128, 128>}, {pipeline_mode = #tpu.pipeline_mode<synchronous>, transform_indices = @transform_6, window_bounds = array<i64: 1, 128>}, {pipeline_mode = #tpu.pipeline_mode<synchronous>, transform_indices = @transform_7, window_bounds = array<i64: 128, 128>}, {pipeline_mode = #tpu.pipeline_mode<synchronous>, transform_indices = @transform_8, window_bounds = array<i64: 1, 128>}, {pipeline_mode = #tpu.pipeline_mode<synchronous>, transform_indices = @transform_9, window_bounds = array<i64: 128, 128>}, {pipeline_mode = #tpu.pipeline_mode<synchronous>, transform_indices = @transform_10, window_bounds = array<i64: 1, 128>}, {pipeline_mode = #tpu.pipeline_mode<synchronous>, transform_indices = @transform_11, window_bounds = array<i64: 128, 128>}, {pipeline_mode = #tpu.pipeline_mode<synchronous>, transform_indices = @transform_12, window_bounds = array<i64: 1, 128>}, {transform_indices = @transform_13, window_bounds = array<i64: 128, 128>}]} {
    %c0 = arith.constant 0 : index
    %c0_0 = arith.constant 0 : index
    %0 = vector.load %arg1[%c0, %c0_0] : memref<128x32xf32, #tpu.memory_space<vmem>>, vector<128x32xf32>
    %1 = arith.truncf %0 : vector<128x32xf32> to vector<128x32xbf16>
    %c0_1 = arith.constant 0 : index
    %c0_2 = arith.constant 0 : index
    %2 = vector.load %arg2[%c0_1, %c0_2] : memref<32x128xbf16, #tpu.memory_space<vmem>>, vector<32x128xbf16>
    %cst = arith.constant dense<0.000000e+00> : vector<128x128xf32>
    %3 = tpu.matmul %1, %2, %cst {dimension_numbers = #tpu.dot_dimension_numbers<[1], [0], [0], [1], [0, 0, 1, 1], [], []>} : vector<128x32xbf16>, vector<32x128xbf16>, vector<128x128xf32> -> vector<128x128xf32>
    %4 = arith.truncf %3 : vector<128x128xf32> to vector<128x128xbf16>
    %c0_3 = arith.constant 0 : index
    %c0_4 = arith.constant 0 : index
    %5 = vector.load %arg3[%c0_3, %c0_4] : memref<1x128xbf16, #tpu.memory_space<vmem>>, vector<1x128xbf16>
    %6 = vector.broadcast %5 : vector<1x128xbf16> to vector<128x128xbf16>
    %7 = arith.addf %4, %6 : vector<128x128xbf16>
    %cst_5 = arith.constant 1.000980e-02 : bf16
    %8 = vector.broadcast %cst_5 : bf16 to vector<128x128xbf16>
    %9 = arith.mulf %8, %7 : vector<128x128xbf16>
    %10 = arith.maximumf %7, %9 : vector<128x128xbf16>
    %c0_6 = arith.constant 0 : index
    %c0_7 = arith.constant 0 : index
    %11 = vector.load %arg4[%c0_6, %c0_7] : memref<128x128xbf16, #tpu.memory_space<vmem>>, vector<128x128xbf16>
    %cst_8 = arith.constant dense<0.000000e+00> : vector<128x128xf32>
    %12 = tpu.matmul %10, %11, %cst_8 {dimension_numbers = #tpu.dot_dimension_numbers<[1], [0], [0], [1], [0, 0, 1, 1], [], []>} : vector<128x128xbf16>, vector<128x128xbf16>, vector<128x128xf32> -> vector<128x128xf32>
    %13 = arith.truncf %12 : vector<128x128xf32> to vector<128x128xbf16>
    %c0_9 = arith.constant 0 : index
    %c0_10 = arith.constant 0 : index
    %14 = vector.load %arg5[%c0_9, %c0_10] : memref<1x128xbf16, #tpu.memory_space<vmem>>, vector<1x128xbf16>
    %15 = vector.broadcast %14 : vector<1x128xbf16> to vector<128x128xbf16>
    %16 = arith.addf %13, %15 : vector<128x128xbf16>
    %cst_11 = arith.constant 1.000980e-02 : bf16
    %17 = vector.broadcast %cst_11 : bf16 to vector<128x128xbf16>
    %18 = arith.mulf %17, %16 : vector<128x128xbf16>
    %19 = arith.maximumf %16, %18 : vector<128x128xbf16>
    %c0_12 = arith.constant 0 : index
    %c0_13 = arith.constant 0 : index
    %20 = vector.load %arg6[%c0_12, %c0_13] : memref<128x128xbf16, #tpu.memory_space<vmem>>, vector<128x128xbf16>
    %cst_14 = arith.constant dense<0.000000e+00> : vector<128x128xf32>
    %21 = tpu.matmul %19, %20, %cst_14 {dimension_numbers = #tpu.dot_dimension_numbers<[1], [0], [0], [1], [0, 0, 1, 1], [], []>} : vector<128x128xbf16>, vector<128x128xbf16>, vector<128x128xf32> -> vector<128x128xf32>
    %22 = arith.truncf %21 : vector<128x128xf32> to vector<128x128xbf16>
    %c0_15 = arith.constant 0 : index
    %c0_16 = arith.constant 0 : index
    %23 = vector.load %arg7[%c0_15, %c0_16] : memref<1x128xbf16, #tpu.memory_space<vmem>>, vector<1x128xbf16>
    %24 = vector.broadcast %23 : vector<1x128xbf16> to vector<128x128xbf16>
    %25 = arith.addf %22, %24 : vector<128x128xbf16>
    %cst_17 = arith.constant 1.000980e-02 : bf16
    %26 = vector.broadcast %cst_17 : bf16 to vector<128x128xbf16>
    %27 = arith.mulf %26, %25 : vector<128x128xbf16>
    %28 = arith.maximumf %25, %27 : vector<128x128xbf16>
    %c0_18 = arith.constant 0 : index
    %c0_19 = arith.constant 0 : index
    %29 = vector.load %arg8[%c0_18, %c0_19] : memref<128x128xbf16, #tpu.memory_space<vmem>>, vector<128x128xbf16>
    %cst_20 = arith.constant dense<0.000000e+00> : vector<128x128xf32>
    %30 = tpu.matmul %28, %29, %cst_20 {dimension_numbers = #tpu.dot_dimension_numbers<[1], [0], [0], [1], [0, 0, 1, 1], [], []>} : vector<128x128xbf16>, vector<128x128xbf16>, vector<128x128xf32> -> vector<128x128xf32>
    %31 = arith.truncf %30 : vector<128x128xf32> to vector<128x128xbf16>
    %c0_21 = arith.constant 0 : index
    %c0_22 = arith.constant 0 : index
    %32 = vector.load %arg9[%c0_21, %c0_22] : memref<1x128xbf16, #tpu.memory_space<vmem>>, vector<1x128xbf16>
    %33 = vector.broadcast %32 : vector<1x128xbf16> to vector<128x128xbf16>
    %34 = arith.addf %31, %33 : vector<128x128xbf16>
    %cst_23 = arith.constant 1.000980e-02 : bf16
    %35 = vector.broadcast %cst_23 : bf16 to vector<128x128xbf16>
    %36 = arith.mulf %35, %34 : vector<128x128xbf16>
    %37 = arith.maximumf %34, %36 : vector<128x128xbf16>
    %c0_24 = arith.constant 0 : index
    %c0_25 = arith.constant 0 : index
    %38 = vector.load %arg10[%c0_24, %c0_25] : memref<128x128xbf16, #tpu.memory_space<vmem>>, vector<128x128xbf16>
    %cst_26 = arith.constant dense<0.000000e+00> : vector<128x128xf32>
    %39 = tpu.matmul %37, %38, %cst_26 {dimension_numbers = #tpu.dot_dimension_numbers<[1], [0], [0], [1], [0, 0, 1, 1], [], []>} : vector<128x128xbf16>, vector<128x128xbf16>, vector<128x128xf32> -> vector<128x128xf32>
    %40 = arith.truncf %39 : vector<128x128xf32> to vector<128x128xbf16>
    %c0_27 = arith.constant 0 : index
    %c0_28 = arith.constant 0 : index
    %41 = vector.load %arg11[%c0_27, %c0_28] : memref<1x128xbf16, #tpu.memory_space<vmem>>, vector<1x128xbf16>
    %42 = vector.broadcast %41 : vector<1x128xbf16> to vector<128x128xbf16>
    %43 = arith.addf %40, %42 : vector<128x128xbf16>
    %cst_29 = arith.constant 1.000980e-02 : bf16
    %44 = vector.broadcast %cst_29 : bf16 to vector<128x128xbf16>
    %45 = arith.mulf %44, %43 : vector<128x128xbf16>
    %46 = arith.maximumf %43, %45 : vector<128x128xbf16>
    %c0_30 = arith.constant 0 : index
    %c0_31 = arith.constant 0 : index
    %47 = vector.load %arg12[%c0_30, %c0_31] : memref<128x128xbf16, #tpu.memory_space<vmem>>, vector<128x128xbf16>
    %cst_32 = arith.constant dense<0.000000e+00> : vector<128x128xf32>
    %48 = tpu.matmul %46, %47, %cst_32 {dimension_numbers = #tpu.dot_dimension_numbers<[1], [0], [0], [1], [0, 0, 1, 1], [], []>} : vector<128x128xbf16>, vector<128x128xbf16>, vector<128x128xf32> -> vector<128x128xf32>
    %49 = arith.truncf %48 : vector<128x128xf32> to vector<128x128xbf16>
    %c0_33 = arith.constant 0 : index
    %c0_34 = arith.constant 0 : index
    %50 = vector.load %arg13[%c0_33, %c0_34] : memref<1x128xbf16, #tpu.memory_space<vmem>>, vector<1x128xbf16>
    %51 = vector.broadcast %50 : vector<1x128xbf16> to vector<128x128xbf16>
    %52 = arith.addf %49, %51 : vector<128x128xbf16>
    %c0_35 = arith.constant 0 : index
    %c0_36 = arith.constant 0 : index
    %53 = vector.load %arg14[%c0_35, %c0_36] : memref<128x128xbf16, #tpu.memory_space<vmem>>, vector<128x128xbf16>
    tpu.vector_store %arg14[%c0_35, %c0_36], %52 {strides = array<i32>} : memref<128x128xbf16, #tpu.memory_space<vmem>>, vector<128x128xbf16>,
    return
  }
  func.func @transform_0(%arg0: i32) -> (i32, i32) {
    %c0_i32 = arith.constant 0 : i32
    %c0_i32_0 = arith.constant 0 : i32
    return %arg0, %c0_i32 : i32, i32
  }
  func.func @transform_1(%arg0: i32) -> (i32, i32) {
    %c0_i32 = arith.constant 0 : i32
    %c0_i32_0 = arith.constant 0 : i32
    %c0_i32_1 = arith.constant 0 : i32
    return %c0_i32, %c0_i32_0 : i32, i32
  }
  func.func @transform_2(%arg0: i32) -> (i32, i32) {
    %c0_i32 = arith.constant 0 : i32
    %c0_i32_0 = arith.constant 0 : i32
    %c0_i32_1 = arith.constant 0 : i32
    return %c0_i32, %c0_i32_0 : i32, i32
  }
  func.func @transform_3(%arg0: i32) -> (i32, i32) {
    %c0_i32 = arith.constant 0 : i32
    %c0_i32_0 = arith.constant 0 : i32
    %c0_i32_1 = arith.constant 0 : i32
    return %c0_i32, %c0_i32_0 : i32, i32
  }
  func.func @transform_4(%arg0: i32) -> (i32, i32) {
    %c0_i32 = arith.constant 0 : i32
    %c0_i32_0 = arith.constant 0 : i32
    %c0_i32_1 = arith.constant 0 : i32
    return %c0_i32, %c0_i32_0 : i32, i32
  }
  func.func @transform_5(%arg0: i32) -> (i32, i32) {
    %c0_i32 = arith.constant 0 : i32
    %c0_i32_0 = arith.constant 0 : i32
    %c0_i32_1 = arith.constant 0 : i32
    return %c0_i32, %c0_i32_0 : i32, i32
  }
  func.func @transform_6(%arg0: i32) -> (i32, i32) {
    %c0_i32 = arith.constant 0 : i32
    %c0_i32_0 = arith.constant 0 : i32
    %c0_i32_1 = arith.constant 0 : i32
    return %c0_i32, %c0_i32_0 : i32, i32
  }
  func.func @transform_7(%arg0: i32) -> (i32, i32) {
    %c0_i32 = arith.constant 0 : i32
    %c0_i32_0 = arith.constant 0 : i32
    %c0_i32_1 = arith.constant 0 : i32
    return %c0_i32, %c0_i32_0 : i32, i32
  }
  func.func @transform_8(%arg0: i32) -> (i32, i32) {
    %c0_i32 = arith.constant 0 : i32
    %c0_i32_0 = arith.constant 0 : i32
    %c0_i32_1 = arith.constant 0 : i32
    return %c0_i32, %c0_i32_0 : i32, i32
  }
  func.func @transform_9(%arg0: i32) -> (i32, i32) {
    %c0_i32 = arith.constant 0 : i32
    %c0_i32_0 = arith.constant 0 : i32
    %c0_i32_1 = arith.constant 0 : i32
    return %c0_i32, %c0_i32_0 : i32, i32
  }
  func.func @transform_10(%arg0: i32) -> (i32, i32) {
    %c0_i32 = arith.constant 0 : i32
    %c0_i32_0 = arith.constant 0 : i32
    %c0_i32_1 = arith.constant 0 : i32
    return %c0_i32, %c0_i32_0 : i32, i32
  }
  func.func @transform_11(%arg0: i32) -> (i32, i32) {
    %c0_i32 = arith.constant 0 : i32
    %c0_i32_0 = arith.constant 0 : i32
    %c0_i32_1 = arith.constant 0 : i32
    return %c0_i32, %c0_i32_0 : i32, i32
  }
  func.func @transform_12(%arg0: i32) -> (i32, i32) {
    %c0_i32 = arith.constant 0 : i32
    %c0_i32_0 = arith.constant 0 : i32
    %c0_i32_1 = arith.constant 0 : i32
    return %c0_i32, %c0_i32_0 : i32, i32
  }
  func.func @transform_13(%arg0: i32) -> (i32, i32) {
    %c0_i32 = arith.constant 0 : i32
    %c0_i32_0 = arith.constant 0 : i32
    return %arg0, %c0_i32 : i32, i32
  }
}

</mosaic_0001>

<llo_original>
// kernel: pclass_forward.1
$region0: #{pclass_forward.1}
  #allocation0 [shape = 'u32[]', space=smem, size = 0x4, offset = 0x4, fixed_abs, tag = 'smem constant byte address 0x4 - core index']
  #allocation1 [shape = 'u32[72,128]{1,0:T(1,128)}', space=vmem, size = 0x9000, scoped, tag = 'internal scratch']
  %s0 = inlined_call_operand.vmem [shape: f32[256,32], index: 0, kind: input, shape index: {}]
  %s1 = inlined_call_operand.hbm [shape: bf16[32,128], index: 1, kind: input, shape index: {}]
  %s2 = inlined_call_operand.hbm [shape: bf16[1,128], index: 2, kind: input, shape index: {}]
  %s3 = inlined_call_operand.vmem [shape: bf16[128,128], index: 3, kind: input, shape index: {}]
  %s4 = inlined_call_operand.vmem [shape: bf16[1,128], index: 4, kind: input, shape index: {}]
  %s5 = inlined_call_operand.vmem [shape: bf16[128,128], index: 5, kind: input, shape index: {}]
  %s6 = inlined_call_operand.vmem [shape: bf16[1,128], index: 6, kind: input, shape index: {}]
  %s7 = inlined_call_operand.vmem [shape: bf16[128,128], index: 7, kind: input, shape index: {}]
  %s8 = inlined_call_operand.vmem [shape: bf16[1,128], index: 8, kind: input, shape index: {}]
  %s9 = inlined_call_operand.vmem [shape: bf16[128,128], index: 9, kind: input, shape index: {}]
  %s10 = inlined_call_operand.vmem [shape: bf16[1,128], index: 10, kind: input, shape index: {}]
  %s11 = inlined_call_operand.vmem [shape: bf16[128,128], index: 11, kind: input, shape index: {}]
  %s12 = inlined_call_operand.vmem [shape: bf16[1,128], index: 12, kind: input, shape index: {}]
  %s13 = inlined_call_operand.vmem [shape: bf16[256,128], index: 13, kind: output, shape index: {}]
  %s14 = sld [smem:[#allocation0]]
  $region93: #{pclass_forward.1} parent=0
    _
  %s16 = ssub.s32 1, %s14
  %s17 = scalar_select 0, %s16, %s14
  $region1: #{pclass_forward.1} parent=0
    #allocation2 [shape = 'u8[8192]{0}', space=vmem, size = 0x2000, scoped, tag = 'input window, operand 1, single buffered']
    #allocation3 [shape = 's32[2]{0}', space=sflag, size = 0x8, scoped, tag = 'scoped memory for pclass_forward.1']
    #allocation4 [shape = 'u8[512]{0}', space=vmem, size = 0x400, scoped, tag = 'input window, operand 2, single buffered']
    #allocation5 [shape = 's32[1]{0}', space=sflag, size = 0x4, scoped, tag = 'scoped memory for pclass_forward.1']
    %18 = vsyncpa [#allocation3], 0
    %19 = vsyncpa [#allocation5], 0
    loop: start=0, step=1, limit=4
    $region2: #{pclass_forward.1} parent=1 // loop_pre_header
      _
    $region3: #{pclass_forward.1} parent=1 // loop_header
      %s21 = sphi 0, %s25
      %p22 = scmp.ge.s32.totalorder %s21, 4
      %s31 = sphi 0, %s33
      %s34 = sphi 0, %s31
      %s35 = sphi 0, %s34
      %s51 = sphi 0, %s35
      %s55 = sphi 0, %s55
      %s57 = sphi 0, %s55
      %s58 = sphi 0, %s57
      %s72 = sphi 0, %s58
      %s76 = sphi 0, %s76
      %s78 = sphi 0, %s76
      %s79 = sphi 0, %s78
      %s93 = sphi 0, %s79
      %s97 = sphi 0, %s97
      %s99 = sphi 0, %s97
      %s100 = sphi 0, %s99
      %s114 = sphi 0, %s100
      %s118 = sphi 0, %s118
      %s120 = sphi 0, %s118
      %s121 = sphi 0, %s120
      %s135 = sphi 0, %s121
      %s139 = sphi 0, %s139
      %s141 = sphi 0, %s139
      %s142 = sphi 0, %s141
      %s156 = sphi 0, %s142
      %s160 = sphi 0, %s160
      %s162 = sphi 0, %s160
      %s163 = sphi 0, %s162
      %s177 = sphi 0, %s163
      %s181 = sphi 0, %s181
      %s183 = sphi 0, %s181
      %s184 = sphi 0, %s183
      %s198 = sphi 0, %s184
      %s202 = sphi 0, %s202
      %s204 = sphi 0, %s202
      %s205 = sphi 0, %s204
      %s219 = sphi 0, %s205
      %s223 = sphi 0, %s223
      %s225 = sphi 0, %s223
      %s226 = sphi 0, %s225
      %s240 = sphi 0, %s226
      %s244 = sphi 0, %s244
      %s246 = sphi 0, %s244
      %s247 = sphi 0, %s246
      %s261 = sphi 0, %s247
      %s265 = sphi 0, %s265
      %s267 = sphi 0, %s265
      %s268 = sphi 0, %s267
      %s282 = sphi 0, %s268
      %s286 = sphi 0, %s286
      %s288 = sphi 0, %s286
      %s289 = sphi 0, %s288
      %s303 = sphi 0, %s289
      %s309 = sphi 0, %s311
      %s312 = sphi 0, %s309
      %s313 = sphi 0, %s312
      %s329 = sphi 0, %s313
    $region4: #{pclass_forward.1} parent=1 // loop_header_branch
      %24 = sbr.rel (%p22) target = $region8
    $region5: #{pclass_forward.1} parent=1 // loop_body
      %s26 = ssub.s32 %s21, 1
      %s27 = ssub.s32 %s21, 2
      %s28 = sadd.s32 %s21, 1
      %s29 = ssub.s32 %s21, %s28
      %p30 = scmp.eq.s32.totalorder %s29, 0
      %s32 = sadd.s32 %s31, 1
      %s33 = scalar_select %p30, %s31, %s32
      %p36 = pneg %p30
      %p37 = scmp.eq.s32.totalorder %s21, 1
      %p38 = por %p36, %p37
      %p39 = scmp.ne.s32.totalorder %s31, %s34
      %p40 = scmp.eq.s32.totalorder %s21, 0
      %p41 = por %p39, %p40
      %p42 = scmp.ne.s32.totalorder %s31, %s34
      %p43 = scmp.eq.s32.totalorder %s26, 1
      %p44 = por %p42, %p43
      %p45 = scmp.ne.s32.totalorder %s34, %s35
      %p46 = scmp.eq.s32.totalorder %s26, 0
      %p47 = por %p45, %p46
      %p48 = scmp.ne.s32.totalorder %s34, %s35
      %p49 = scmp.eq.s32.totalorder %s27, 1
      %p50 = por %p48, %p49
      %p52 = scmp.ne.s32.totalorder %s35, %s51
      %p53 = scmp.eq.s32.totalorder %s27, 0
      %p54 = por %p52, %p53
      %s56 = sadd.s32 %s55, 1
      %p59 = scmp.eq.s32.totalorder %s21, 1
      %p60 = scmp.ne.s32.totalorder %s55, %s57
      %p61 = scmp.eq.s32.totalorder %s21, 0
      %p62 = por %p60, %p61
      %p63 = scmp.ne.s32.totalorder %s55, %s57
      %p64 = scmp.eq.s32.totalorder %s26, 1
      %p65 = por %p63, %p64
      %p66 = scmp.ne.s32.totalorder %s57, %s58
      %p67 = scmp.eq.s32.totalorder %s26, 0
      %p68 = por %p66, %p67
      %p69 = scmp.ne.s32.totalorder %s57, %s58
      %p70 = scmp.eq.s32.totalorder %s27, 1
      %p71 = por %p69, %p70
      %p73 = scmp.ne.s32.totalorder %s58, %s72
      %p74 = scmp.eq.s32.totalorder %s27, 0
      %p75 = por %p73, %p74
      %s77 = sadd.s32 %s76, 1
      %p80 = scmp.eq.s32.totalorder %s21, 1
      %p81 = scmp.ne.s32.totalorder %s76, %s78
      %p82 = scmp.eq.s32.totalorder %s21, 0
      %p83 = por %p81, %p82
      %p84 = scmp.ne.s32.totalorder %s76, %s78
      %p85 = scmp.eq.s32.totalorder %s26, 1
      %p86 = por %p84, %p85
      %p87 = scmp.ne.s32.totalorder %s78, %s79
      %p88 = scmp.eq.s32.totalorder %s26, 0
      %p89 = por %p87, %p88
      %p90 = scmp.ne.s32.totalorder %s78, %s79
      %p91 = scmp.eq.s32.totalorder %s27, 1
      %p92 = por %p90, %p91
      %p94 = scmp.ne.s32.totalorder %s79, %s93
      %p95 = scmp.eq.s32.totalorder %s27, 0
      %p96 = por %p94, %p95
      %s98 = sadd.s32 %s97, 1
      %p101 = scmp.eq.s32.totalorder %s21, 1
      %p102 = scmp.ne.s32.totalorder %s97, %s99
      %p103 = scmp.eq.s32.totalorder %s21, 0
      %p104 = por %p102, %p103
      %p105 = scmp.ne.s32.totalorder %s97, %s99
      %p106 = scmp.eq.s32.totalorder %s26, 1
      %p107 = por %p105, %p106
      %p108 = scmp.ne.s32.totalorder %s99, %s100
      %p109 = scmp.eq.s32.totalorder %s26, 0
      %p110 = por %p108, %p109
      %p111 = scmp.ne.s32.totalorder %s99, %s100
      %p112 = scmp.eq.s32.totalorder %s27, 1
      %p113 = por %p111, %p112
      %p115 = scmp.ne.s32.totalorder %s100, %s114
      %p116 = scmp.eq.s32.totalorder %s27, 0
      %p117 = por %p115, %p116
      %s119 = sadd.s32 %s118, 1
      %p122 = scmp.eq.s32.totalorder %s21, 1
      %p123 = scmp.ne.s32.totalorder %s118, %s120
      %p124 = scmp.eq.s32.totalorder %s21, 0
      %p125 = por %p123, %p124
      %p126 = scmp.ne.s32.totalorder %s118, %s120
      %p127 = scmp.eq.s32.totalorder %s26, 1
      %p128 = por %p126, %p127
      %p129 = scmp.ne.s32.totalorder %s120, %s121
      %p130 = scmp.eq.s32.totalorder %s26, 0
      %p131 = por %p129, %p130
      %p132 = scmp.ne.s32.totalorder %s120, %s121
      %p133 = scmp.eq.s32.totalorder %s27, 1
      %p134 = por %p132, %p133
      %p136 = scmp.ne.s32.totalorder %s121, %s135
      %p137 = scmp.eq.s32.totalorder %s27, 0
      %p138 = por %p136, %p137
      %s140 = sadd.s32 %s139, 1
      %p143 = scmp.eq.s32.totalorder %s21, 1
      %p144 = scmp.ne.s32.totalorder %s139, %s141
      %p145 = scmp.eq.s32.totalorder %s21, 0
      %p146 = por %p144, %p145
      %p147 = scmp.ne.s32.totalorder %s139, %s141
      %p148 = scmp.eq.s32.totalorder %s26, 1
      %p149 = por %p147, %p148
      %p150 = scmp.ne.s32.totalorder %s141, %s142
      %p151 = scmp.eq.s32.totalorder %s26, 0
      %p152 = por %p150, %p151
      %p153 = scmp.ne.s32.totalorder %s141, %s142
      %p154 = scmp.eq.s32.totalorder %s27, 1
      %p155 = por %p153, %p154
      %p157 = scmp.ne.s32.totalorder %s142, %s156
      %p158 = scmp.eq.s32.totalorder %s27, 0
      %p159 = por %p157, %p158
      %s161 = sadd.s32 %s160, 1
      %p164 = scmp.eq.s32.totalorder %s21, 1
      %p165 = scmp.ne.s32.totalorder %s160, %s162
      %p166 = scmp.eq.s32.totalorder %s21, 0
      %p167 = por %p165, %p166
      %p168 = scmp.ne.s32.totalorder %s160, %s162
      %p169 = scmp.eq.s32.totalorder %s26, 1
      %p170 = por %p168, %p169
      %p171 = scmp.ne.s32.totalorder %s162, %s163
      %p172 = scmp.eq.s32.totalorder %s26, 0
      %p173 = por %p171, %p172
      %p174 = scmp.ne.s32.totalorder %s162, %s163
      %p175 = scmp.eq.s32.totalorder %s27, 1
      %p176 = por %p174, %p175
      %p178 = scmp.ne.s32.totalorder %s163, %s177
      %p179 = scmp.eq.s32.totalorder %s27, 0
      %p180 = por %p178, %p179
      %s182 = sadd.s32 %s181, 1
      %p185 = scmp.eq.s32.totalorder %s21, 1
      %p186 = scmp.ne.s32.totalorder %s181, %s183
      %p187 = scmp.eq.s32.totalorder %s21, 0
      %p188 = por %p186, %p187
      %p189 = scmp.ne.s32.totalorder %s181, %s183
      %p190 = scmp.eq.s32.totalorder %s26, 1
      %p191 = por %p189, %p190
      %p192 = scmp.ne.s32.totalorder %s183, %s184
      %p193 = scmp.eq.s32.totalorder %s26, 0
      %p194 = por %p192, %p193
      %p195 = scmp.ne.s32.totalorder %s183, %s184
      %p196 = scmp.eq.s32.totalorder %s27, 1
      %p197 = por %p195, %p196
      %p199 = scmp.ne.s32.totalorder %s184, %s198
      %p200 = scmp.eq.s32.totalorder %s27, 0
      %p201 = por %p199, %p200
      %s203 = sadd.s32 %s202, 1
      %p206 = scmp.eq.s32.totalorder %s21, 1
      %p207 = scmp.ne.s32.totalorder %s202, %s204
      %p208 = scmp.eq.s32.totalorder %s21, 0
      %p209 = por %p207, %p208
      %p210 = scmp.ne.s32.totalorder %s202, %s204
      %p211 = scmp.eq.s32.totalorder %s26, 1
      %p212 = por %p210, %p211
      %p213 = scmp.ne.s32.totalorder %s204, %s205
      %p214 = scmp.eq.s32.totalorder %s26, 0
      %p215 = por %p213, %p214
      %p216 = scmp.ne.s32.totalorder %s204, %s205
      %p217 = scmp.eq.s32.totalorder %s27, 1
      %p218 = por %p216, %p217
      %p220 = scmp.ne.s32.totalorder %s205, %s219
      %p221 = scmp.eq.s32.totalorder %s27, 0
      %p222 = por %p220, %p221
      %s224 = sadd.s32 %s223, 1
      %p227 = scmp.eq.s32.totalorder %s21, 1
      %p228 = scmp.ne.s32.totalorder %s223, %s225
      %p229 = scmp.eq.s32.totalorder %s21, 0
      %p230 = por %p228, %p229
      %p231 = scmp.ne.s32.totalorder %s223, %s225
      %p232 = scmp.eq.s32.totalorder %s26, 1
      %p233 = por %p231, %p232
      %p234 = scmp.ne.s32.totalorder %s225, %s226
      %p235 = scmp.eq.s32.totalorder %s26, 0
      %p236 = por %p234, %p235
      %p237 = scmp.ne.s32.totalorder %s225, %s226
      %p238 = scmp.eq.s32.totalorder %s27, 1
      %p239 = por %p237, %p238
      %p241 = scmp.ne.s32.totalorder %s226, %s240
      %p242 = scmp.eq.s32.totalorder %s27, 0
      %p243 = por %p241, %p242
      %s245 = sadd.s32 %s244, 1
      %p248 = scmp.eq.s32.totalorder %s21, 1
      %p249 = scmp.ne.s32.totalorder %s244, %s246
      %p250 = scmp.eq.s32.totalorder %s21, 0
      %p251 = por %p249, %p250
      %p252 = scmp.ne.s32.totalorder %s244, %s246
      %p253 = scmp.eq.s32.totalorder %s26, 1
      %p254 = por %p252, %p253
      %p255 = scmp.ne.s32.totalorder %s246, %s247
      %p256 = scmp.eq.s32.totalorder %s26, 0
      %p257 = por %p255, %p256
      %p258 = scmp.ne.s32.totalorder %s246, %s247
      %p259 = scmp.eq.s32.totalorder %s27, 1
      %p260 = por %p258, %p259
      %p262 = scmp.ne.s32.totalorder %s247, %s261
      %p263 = scmp.eq.s32.totalorder %s27, 0
      %p264 = por %p262, %p263
      %s266 = sadd.s32 %s265, 1
      %p269 = scmp.eq.s32.totalorder %s21, 1
      %p270 = scmp.ne.s32.totalorder %s265, %s267
      %p271 = scmp.eq.s32.totalorder %s21, 0
      %p272 = por %p270, %p271
      %p273 = scmp.ne.s32.totalorder %s265, %s267
      %p274 = scmp.eq.s32.totalorder %s26, 1
      %p275 = por %p273, %p274
      %p276 = scmp.ne.s32.totalorder %s267, %s268
      %p277 = scmp.eq.s32.totalorder %s26, 0
      %p278 = por %p276, %p277
      %p279 = scmp.ne.s32.totalorder %s267, %s268
      %p280 = scmp.eq.s32.totalorder %s27, 1
      %p281 = por %p279, %p280
      %p283 = scmp.ne.s32.totalorder %s268, %s282
      %p284 = scmp.eq.s32.totalorder %s27, 0
      %p285 = por %p283, %p284
      %s287 = sadd.s32 %s286, 1
      %p290 = scmp.eq.s32.totalorder %s21, 1
      %p291 = scmp.ne.s32.totalorder %s286, %s288
      %p292 = scmp.eq.s32.totalorder %s21, 0
      %p293 = por %p291, %p292
      %p294 = scmp.ne.s32.totalorder %s286, %s288
      %p295 = scmp.eq.s32.totalorder %s26, 1
      %p296 = por %p294, %p295
      %p297 = scmp.ne.s32.totalorder %s288, %s289
      %p298 = scmp.eq.s32.totalorder %s26, 0
      %p299 = por %p297, %p298
      %p300 = scmp.ne.s32.totalorder %s288, %s289
      %p301 = scmp.eq.s32.totalorder %s27, 1
      %p302 = por %p300, %p301
      %p304 = scmp.ne.s32.totalorder %s289, %s303
      %p305 = scmp.eq.s32.totalorder %s27, 0
      %p306 = por %p304, %p305
      %s307 = ssub.s32 %s21, %s28
      %p308 = scmp.eq.s32.totalorder %s307, 0
      %s310 = sadd.s32 %s309, 1
      %s311 = scalar_select %p308, %s309, %s310
      %p314 = pneg %p308
      %p315 = scmp.eq.s32.totalorder %s21, 1
      %p316 = por %p314, %p315
      %p317 = scmp.ne.s32.totalorder %s309, %s312
      %p318 = scmp.eq.s32.totalorder %s21, 0
      %p319 = por %p317, %p318
      %p320 = scmp.ne.s32.totalorder %s309, %s312
      %p321 = scmp.eq.s32.totalorder %s26, 1
      %p322 = por %p320, %p321
      %p323 = scmp.ne.s32.totalorder %s312, %s313
      %p324 = scmp.eq.s32.totalorder %s26, 0
      %p325 = por %p323, %p324
      %p326 = scmp.ne.s32.totalorder %s312, %s313
      %p327 = scmp.eq.s32.totalorder %s27, 1
      %p328 = por %p326, %p327
      %p330 = scmp.ne.s32.totalorder %s313, %s329
      %p331 = scmp.eq.s32.totalorder %s27, 0
      %p332 = por %p330, %p331
      %p333 = scmp.le.s32.totalorder 1, %s21
      %p334 = scmp.lt.s32.totalorder %s21, 3
      %p335 = pnand %p333, %p334
      %p336 = pneg %p335
      // Predicated region
      $region9: #{pclass_forward.1} parent=5 // pred_check
        _
      $region10: #{pclass_forward.1} parent=5 // pred_check_branch
        %338 = sbr.rel (%p335) target = $region12
      $region11: #{pclass_forward.1} parent=5 // pred_region
        %s339 = ssub.s32 %s21, 1
        // Predicated region
        $region13: #{pclass_forward.1} parent=11 // pred_check
          %p340 = pneg %p68
        $region14: #{pclass_forward.1} parent=11 // pred_check_branch
          %342 = sbr.rel (%p340) target = $region16
        $region15: #{pclass_forward.1} parent=11 // pred_region
          %344 = vsyncadd [#allocation3], 0
          %s345 = sshll.u32 %s1, 4
          %s346 = int_to_ptr.hbm [resolvable:$true] %s345
          %s347 = sshll.u32 [#allocation2], 4
          %s348 = int_to_ptr.vmem [resolvable:$true] %s347
          %353 = dma.hbm_to_vmem [thread:$0]  %s346, 256, %s348, [#allocation3], 64, 64, 4
        $region16: #{pclass_forward.1} parent=11 // pred_fallthru
          _
        // Predicated region
        $region17: #{pclass_forward.1} parent=11 // pred_check
          %p354 = pneg %p89
        $region18: #{pclass_forward.1} parent=11 // pred_check_branch
          %356 = sbr.rel (%p354) target = $region20
        $region19: #{pclass_forward.1} parent=11 // pred_region
          %358 = vsyncadd [#allocation5], 0
          %s360 = sshll.u32 %s2, 4
          %s361 = int_to_ptr.hbm [resolvable:$true] %s360
          %s362 = sshll.u32 [#allocation4], 4
          %s363 = int_to_ptr.vmem [resolvable:$true] %s362
          %365 = dma.hbm_to_vmem [thread:$0]  %s361, 16, %s363, [#allocation5]
        $region20: #{pclass_forward.1} parent=11 // pred_fallthru
          _
        // Predicated region
        $region21: #{pclass_forward.1} parent=11 // pred_check
          %p366 = pneg %p110
        $region22: #{pclass_forward.1} parent=11 // pred_check_branch
          %368 = sbr.rel (%p366) target = $region24
        $region23: #{pclass_forward.1} parent=11 // pred_region
          _
        $region24: #{pclass_forward.1} parent=11 // pred_fallthru
          _
        // Predicated region
        $region25: #{pclass_forward.1} parent=11 // pred_check
          %p369 = pneg %p131
        $region26: #{pclass_forward.1} parent=11 // pred_check_branch
          %371 = sbr.rel (%p369) target = $region28
        $region27: #{pclass_forward.1} parent=11 // pred_region
          _
        $region28: #{pclass_forward.1} parent=11 // pred_fallthru
          _
        // Predicated region
        $region29: #{pclass_forward.1} parent=11 // pred_check
          %p372 = pneg %p152
        $region30: #{pclass_forward.1} parent=11 // pred_check_branch
          %374 = sbr.rel (%p372) target = $region32
        $region31: #{pclass_forward.1} parent=11 // pred_region
          _
        $region32: #{pclass_forward.1} parent=11 // pred_fallthru
          _
        // Predicated region
        $region33: #{pclass_forward.1} parent=11 // pred_check
          %p375 = pneg %p173
        $region34: #{pclass_forward.1} parent=11 // pred_check_branch
          %377 = sbr.rel (%p375) target = $region36
        $region35: #{pclass_forward.1} parent=11 // pred_region
          _
        $region36: #{pclass_forward.1} parent=11 // pred_fallthru
          _
        // Predicated region
        $region37: #{pclass_forward.1} parent=11 // pred_check
          %p378 = pneg %p194
        $region38: #{pclass_forward.1} parent=11 // pred_check_branch
          %380 = sbr.rel (%p378) target = $region40
        $region39: #{pclass_forward.1} parent=11 // pred_region
          _
        $region40: #{pclass_forward.1} parent=11 // pred_fallthru
          _
        // Predicated region
        $region41: #{pclass_forward.1} parent=11 // pred_check
          %p381 = pneg %p215
        $region42: #{pclass_forward.1} parent=11 // pred_check_branch
          %383 = sbr.rel (%p381) target = $region44
        $region43: #{pclass_forward.1} parent=11 // pred_region
          _
        $region44: #{pclass_forward.1} parent=11 // pred_fallthru
          _
        // Predicated region
        $region45: #{pclass_forward.1} parent=11 // pred_check
          %p384 = pneg %p236
        $region46: #{pclass_forward.1} parent=11 // pred_check_branch
          %386 = sbr.rel (%p384) target = $region48
        $region47: #{pclass_forward.1} parent=11 // pred_region
          _
        $region48: #{pclass_forward.1} parent=11 // pred_fallthru
          _
        // Predicated region
        $region49: #{pclass_forward.1} parent=11 // pred_check
          %p387 = pneg %p257
        $region50: #{pclass_forward.1} parent=11 // pred_check_branch
          %389 = sbr.rel (%p387) target = $region52
        $region51: #{pclass_forward.1} parent=11 // pred_region
          _
        $region52: #{pclass_forward.1} parent=11 // pred_fallthru
          _
        // Predicated region
        $region53: #{pclass_forward.1} parent=11 // pred_check
          %p390 = pneg %p278
        $region54: #{pclass_forward.1} parent=11 // pred_check_branch
          %392 = sbr.rel (%p390) target = $region56
        $region55: #{pclass_forward.1} parent=11 // pred_region
          _
        $region56: #{pclass_forward.1} parent=11 // pred_fallthru
          _
        // Predicated region
        $region57: #{pclass_forward.1} parent=11 // pred_check
          %p393 = pneg %p299
        $region58: #{pclass_forward.1} parent=11 // pred_check_branch
          %395 = sbr.rel (%p393) target = $region60
        $region59: #{pclass_forward.1} parent=11 // pred_region
          _
        $region60: #{pclass_forward.1} parent=11 // pred_fallthru
          _
      $region12: #{pclass_forward.1} parent=5 // pred_fallthru
        _
      %p396 = scmp.lt.s32.totalorder %s21, 2
      // Predicated region
      $region61: #{pclass_forward.1} parent=5 // pred_check
        %p397 = pneg %p396
      $region62: #{pclass_forward.1} parent=5 // pred_check_branch
        %399 = sbr.rel (%p397) target = $region64
      $region63: #{pclass_forward.1} parent=5 // pred_region
        // Predicated region
        $region65: #{pclass_forward.1} parent=63 // pred_check
          %p400 = pneg %p41
        $region66: #{pclass_forward.1} parent=63 // pred_check_branch
          %402 = sbr.rel (%p400) target = $region68
        $region67: #{pclass_forward.1} parent=63 // pred_region
          %s403 = smul.u32 16, %s21
          %p404 = scmp.lt.s32.totalorder %s403, 31
          %s405 = scalar_select %p404, %s403, 31
          %s406 = smul.addr %s405, 8
          %s407 = scalar_lea.vmem %s0, %s406
          %s408 = smul.u32 16, %s21
        $region68: #{pclass_forward.1} parent=63 // pred_fallthru
          _
      $region64: #{pclass_forward.1} parent=5 // pred_fallthru
        _
      %p409 = scmp.le.s32.totalorder 1, %s21
      %p410 = scmp.lt.s32.totalorder %s21, 3
      %p411 = pnand %p409, %p410
      %p412 = pneg %p411
      // Predicated region
      $region69: #{pclass_forward.1} parent=5 // pred_check
        _
      $region70: #{pclass_forward.1} parent=5 // pred_check_branch
        %414 = sbr.rel (%p411) target = $region72
      $region71: #{pclass_forward.1} parent=5 // pred_region
        %s415 = ssub.s32 %s21, 1
        // Predicated region
        $region73: #{pclass_forward.1} parent=71 // pred_check
          %p416 = pneg %p68
        $region74: #{pclass_forward.1} parent=71 // pred_check_branch
          %418 = sbr.rel (%p416) target = $region76
        $region75: #{pclass_forward.1} parent=71 // pred_region
          %420 = dma.done [#allocation3], 256
        $region76: #{pclass_forward.1} parent=71 // pred_fallthru
          _
        // Predicated region
        $region77: #{pclass_forward.1} parent=71 // pred_check
          %p421 = pneg %p89
        $region78: #{pclass_forward.1} parent=71 // pred_check_branch
          %423 = sbr.rel (%p421) target = $region80
        $region79: #{pclass_forward.1} parent=71 // pred_region
          %425 = dma.done [#allocation5], 16
        $region80: #{pclass_forward.1} parent=71 // pred_fallthru
          _
        %s426 = smul.u32 16, %s26
        %p427 = scmp.lt.s32.totalorder %s426, 31
        %s428 = scalar_select %p427, %s426, 31
        %s429 = smul.addr %s428, 8
        %s430 = scalar_lea.vmem %s0, %s429
        %p431 = pneg %p47
        %p432 = pneg %p44
        %p433 = pneg %p68
        %p434 = pneg %p65
        %p435 = pneg %p89
        %p436 = pneg %p86
        %p437 = pneg %p110
        %p438 = pneg %p107
        %p439 = pneg %p131
        %p440 = pneg %p128
        %p441 = pneg %p152
        %p442 = pneg %p149
        %p443 = pneg %p173
        %p444 = pneg %p170
        %p445 = pneg %p194
        %p446 = pneg %p191
        %p447 = pneg %p215
        %p448 = pneg %p212
        %p449 = pneg %p236
        %p450 = pneg %p233
        %p451 = pneg %p257
        %p452 = pneg %p254
        %p453 = pneg %p278
        %p454 = pneg %p275
        %p455 = pneg %p299
        %p456 = pneg %p296
        %p457 = pneg %p325
        %p458 = pneg %p322
        %s459 = smul.u32 16, %s26
        %p460 = scmp.lt.s32.totalorder %s459, 31
        %s461 = scalar_select %p460, %s459, 31
        %s462 = smul.addr %s461, 4
        %s463 = scalar_lea.vmem %s13, %s462
        %s464 = smul.u32 16, %s26
        %p465 = scmp.lt.s32.totalorder %s464, 31
        %s466 = scalar_select %p465, %s464, 31
        %s467 = smul.addr %s466, 8
        %s468 = scalar_lea.vmem %s0, %s467
        %s469 = smul.u32 16, %s26
        %s470 = smul.u32 16, %s26
        %p471 = scmp.lt.s32.totalorder %s470, 31
        %s472 = scalar_select %p471, %s470, 31
        %s473 = smul.addr %s472, 4
        %s474 = scalar_lea.vmem %s13, %s473
        %s475 = smul.u32 16, %s26
        %v477 = vld [vmem:[%s468] sm:$0xff]
        %v478 = vld [vmem:[%s468 + $0x8] sm:$0xff]
        %v479 = vld [vmem:[%s468 + $0x10] sm:$0xff]
        %v480 = vld [vmem:[%s468 + $0x18] sm:$0xff]
        %v481 = vld [vmem:[%s468 + $0x20] sm:$0xff]
        %v482 = vld [vmem:[%s468 + $0x28] sm:$0xff]
        %v483 = vld [vmem:[%s468 + $0x30] sm:$0xff]
        %v484 = vld [vmem:[%s468 + $0x38] sm:$0xff]
        %v485 = vld [vmem:[%s468 + $0x40] sm:$0xff]
        %v486 = vld [vmem:[%s468 + $0x48] sm:$0xff]
        %v487 = vld [vmem:[%s468 + $0x50] sm:$0xff]
        %v488 = vld [vmem:[%s468 + $0x58] sm:$0xff]
        %v489 = vld [vmem:[%s468 + $0x60] sm:$0xff]
        %v490 = vld [vmem:[%s468 + $0x68] sm:$0xff]
        %v491 = vld [vmem:[%s468 + $0x70] sm:$0xff]
        %v492 = vld [vmem:[%s468 + $0x78] sm:$0xff]
        %v493 = vpack.c.bf16 %v478, %v477
        %v494 = vpack.c.bf16 %v480, %v479
        %v495 = vpack.c.bf16 %v482, %v481
        %v496 = vpack.c.bf16 %v484, %v483
        %v497 = vpack.c.bf16 %v486, %v485
        %v498 = vpack.c.bf16 %v488, %v487
        %v499 = vpack.c.bf16 %v490, %v489
        %v500 = vpack.c.bf16 %v492, %v491
        %v501 = vld [vmem:[#allocation2] sm:$0xf]
        %v502 = vld [vmem:[#allocation2 + $0x4] sm:$0xf]
        %v503 = vld [vmem:[#allocation2 + $0x8] sm:$0xf]
        %v504 = vld [vmem:[#allocation2 + $0xc] sm:$0xf]
        %v509 = vunpack.c.l.b16 %v501
        %v510 = vunpack.c.l.b16 %v502
        %v511 = vunpack.c.l.b16 %v503
        %v512 = vunpack.c.l.b16 %v504
        %v513 = vpack.c.b16 %v510, %v509
        %v514 = vpack.c.b16 %v512, %v511
        %vm517 = vcmask 261120
        %v519 = vsel %vm517, %v493, 0
        %v522 = vsel %vm517, %v494, 0
        %v525 = vsel %vm517, %v495, 0
        %v528 = vsel %vm517, %v496, 0
        %v531 = vsel %vm517, %v497, 0
        %v534 = vsel %vm517, %v498, 0
        %v537 = vsel %vm517, %v499, 0
        %v540 = vsel %vm517, %v500, 0
        %542 = vmatpush.bf16.msra.mxu0 0
        %543 = vmatpush.bf16.msra.mxu0 0
        %544 = vmatpush.bf16.msra.mxu0 0
        %545 = vmatpush.bf16.msra.mxu0 0
        %546 = vmatpush.bf16.msra.mxu0 0
        %547 = vmatpush.bf16.msra.mxu0 0
        %548 = vmatpush.bf16.msra.mxu0 %v514
        %549 = vmatpush.bf16.msra.mxu0 %v513
        %550 = vmatmul.bf16.gmra.mxu0 %v519
        %v551 = vpop.f32.mrf.mxu0
        %v552 = vadd.f32 0.0, %v551
        %v553 = vpop.f32.mrf.mxu0
        %v554 = vadd.f32 0.0, %v553
        %555 = vmatmul.bf16.gmra.mxu0 %v522
        %v556 = vpop.f32.mrf.mxu0
        %v557 = vadd.f32 0.0, %v556
        %v558 = vpop.f32.mrf.mxu0
        %v559 = vadd.f32 0.0, %v558
        %560 = vmatmul.bf16.gmra.mxu0 %v525
        %v561 = vpop.f32.mrf.mxu0
        %v562 = vadd.f32 0.0, %v561
        %v563 = vpop.f32.mrf.mxu0
        %v564 = vadd.f32 0.0, %v563
        %565 = vmatmul.bf16.gmra.mxu0 %v528
        %v566 = vpop.f32.mrf.mxu0
        %v567 = vadd.f32 0.0, %v566
        %v568 = vpop.f32.mrf.mxu0
        %v569 = vadd.f32 0.0, %v568
        %570 = vmatmul.bf16.gmra.mxu0 %v531
        %v571 = vpop.f32.mrf.mxu0
        %v572 = vadd.f32 0.0, %v571
        %v573 = vpop.f32.mrf.mxu0
        %v574 = vadd.f32 0.0, %v573
        %575 = vmatmul.bf16.gmra.mxu0 %v534
        %v576 = vpop.f32.mrf.mxu0
        %v577 = vadd.f32 0.0, %v576
        %v578 = vpop.f32.mrf.mxu0
        %v579 = vadd.f32 0.0, %v578
        %580 = vmatmul.bf16.gmra.mxu0 %v537
        %v581 = vpop.f32.mrf.mxu0
        %v582 = vadd.f32 0.0, %v581
        %v583 = vpop.f32.mrf.mxu0
        %v584 = vadd.f32 0.0, %v583
        %585 = vmatmul.bf16.gmra.mxu0 %v540
        %v586 = vpop.f32.mrf.mxu0
        %v587 = vadd.f32 0.0, %v586
        %v588 = vpop.f32.mrf.mxu0
        %v589 = vadd.f32 0.0, %v588
        %590 = vdwg.mxu0
        %v591 = vpack.c.bf16 %v552, %v552
        %v592 = vpack.c.bf16 %v554, %v554
        %v593 = vpack.c.bf16 %v557, %v557
        %v594 = vpack.c.bf16 %v559, %v559
        %v595 = vpack.c.bf16 %v562, %v562
        %v596 = vpack.c.bf16 %v564, %v564
        %v597 = vpack.c.bf16 %v567, %v567
        %v598 = vpack.c.bf16 %v569, %v569
        %v599 = vpack.c.bf16 %v572, %v572
        %v600 = vpack.c.bf16 %v574, %v574
        %v601 = vpack.c.bf16 %v577, %v577
        %v602 = vpack.c.bf16 %v579, %v579
        %v603 = vpack.c.bf16 %v582, %v582
        %v604 = vpack.c.bf16 %v584, %v584
        %v605 = vpack.c.bf16 %v587, %v587
        %v606 = vpack.c.bf16 %v589, %v589
        %v607 = vld [vmem:[#allocation4] sm:$0x1]
        %v609 = vpack.i.b16 %v607, %v607
        %v611 = vperm.slane %v609, 0
        %v612 = vunpack.c.l.bf16 %v591
        %v613 = vunpack.c.l.bf16 %v592
        %v614 = vunpack.c.l.bf16 %v593
        %v615 = vunpack.c.l.bf16 %v594
        %v616 = vunpack.c.l.bf16 %v595
        %v617 = vunpack.c.l.bf16 %v596
        %v618 = vunpack.c.l.bf16 %v597
        %v619 = vunpack.c.l.bf16 %v598
        %v620 = vunpack.c.l.bf16 %v599
        %v621 = vunpack.c.l.bf16 %v600
        %v622 = vunpack.c.l.bf16 %v601
        %v623 = vunpack.c.l.bf16 %v602
        %v624 = vunpack.c.l.bf16 %v603
        %v625 = vunpack.c.l.bf16 %v604
        %v626 = vunpack.c.l.bf16 %v605
        %v627 = vunpack.c.l.bf16 %v606
        %v628 = vunpack.c.l.bf16 %v611
        %v629 = vadd.f32 %v612, %v628
        %v630 = vadd.f32 %v613, %v628
        %v631 = vadd.f32 %v614, %v628
        %v632 = vadd.f32 %v615, %v628
        %v633 = vadd.f32 %v616, %v628
        %v634 = vadd.f32 %v617, %v628
        %v635 = vadd.f32 %v618, %v628
        %v636 = vadd.f32 %v619, %v628
        %v637 = vadd.f32 %v620, %v628
        %v638 = vadd.f32 %v621, %v628
        %v639 = vadd.f32 %v622, %v628
        %v640 = vadd.f32 %v623, %v628
        %v641 = vadd.f32 %v624, %v628
        %v642 = vadd.f32 %v625, %v628
        %v643 = vadd.f32 %v626, %v628
        %v644 = vadd.f32 %v627, %v628
        %v645 = vpack.c.bf16 %v629, %v629
        %v646 = vpack.c.bf16 %v630, %v630
        %v647 = vpack.c.bf16 %v631, %v631
        %v648 = vpack.c.bf16 %v632, %v632
        %v649 = vpack.c.bf16 %v633, %v633
        %v650 = vpack.c.bf16 %v634, %v634
        %v651 = vpack.c.bf16 %v635, %v635
        %v652 = vpack.c.bf16 %v636, %v636
        %v653 = vpack.c.bf16 %v637, %v637
        %v654 = vpack.c.bf16 %v638, %v638
        %v655 = vpack.c.bf16 %v639, %v639
        %v656 = vpack.c.bf16 %v640, %v640
        %v657 = vpack.c.bf16 %v641, %v641
        %v658 = vpack.c.bf16 %v642, %v642
        %v659 = vpack.c.bf16 %v643, %v643
        %v660 = vpack.c.bf16 %v644, %v644
        %v661 = vunpack.c.l.bf16 %v645
        %v662 = vunpack.c.l.bf16 %v646
        %v663 = vunpack.c.l.bf16 %v647
        %v664 = vunpack.c.l.bf16 %v648
        %v665 = vunpack.c.l.bf16 %v649
        %v666 = vunpack.c.l.bf16 %v650
        %v667 = vunpack.c.l.bf16 %v651
        %v668 = vunpack.c.l.bf16 %v652
        %v669 = vunpack.c.l.bf16 %v653
        %v670 = vunpack.c.l.bf16 %v654
        %v671 = vunpack.c.l.bf16 %v655
        %v672 = vunpack.c.l.bf16 %v656
        %v673 = vunpack.c.l.bf16 %v657
        %v674 = vunpack.c.l.bf16 %v658
        %v675 = vunpack.c.l.bf16 %v659
        %v676 = vunpack.c.l.bf16 %v660
        %v677 = vmul.f32 %v661, 0.010009766
        %v678 = vmul.f32 %v662, 0.010009766
        %v679 = vmul.f32 %v663, 0.010009766
        %v680 = vmul.f32 %v664, 0.010009766
        %v681 = vmul.f32 %v665, 0.010009766
        %v682 = vmul.f32 %v666, 0.010009766
        %v683 = vmul.f32 %v667, 0.010009766
        %v684 = vmul.f32 %v668, 0.010009766
        %v685 = vmul.f32 %v669, 0.010009766
        %v686 = vmul.f32 %v670, 0.010009766
        %v687 = vmul.f32 %v671, 0.010009766
        %v688 = vmul.f32 %v672, 0.010009766
        %v689 = vmul.f32 %v673, 0.010009766
        %v690 = vmul.f32 %v674, 0.010009766
        %v691 = vmul.f32 %v675, 0.010009766
        %v692 = vmul.f32 %v676, 0.010009766
        %v693 = vpack.c.bf16 %v677, %v677
        %v694 = vpack.c.bf16 %v678, %v678
        %v695 = vpack.c.bf16 %v679, %v679
        %v696 = vpack.c.bf16 %v680, %v680
        %v697 = vpack.c.bf16 %v681, %v681
        %v698 = vpack.c.bf16 %v682, %v682
        %v699 = vpack.c.bf16 %v683, %v683
        %v700 = vpack.c.bf16 %v684, %v684
        %v701 = vpack.c.bf16 %v685, %v685
        %v702 = vpack.c.bf16 %v686, %v686
        %v703 = vpack.c.bf16 %v687, %v687
        %v704 = vpack.c.bf16 %v688, %v688
        %v705 = vpack.c.bf16 %v689, %v689
        %v706 = vpack.c.bf16 %v690, %v690
        %v707 = vpack.c.bf16 %v691, %v691
        %v708 = vpack.c.bf16 %v692, %v692
        %v709 = vunpack.c.l.bf16 %v693
        %v710 = vunpack.c.l.bf16 %v694
        %v711 = vunpack.c.l.bf16 %v695
        %v712 = vunpack.c.l.bf16 %v696
        %v713 = vunpack.c.l.bf16 %v697
        %v714 = vunpack.c.l.bf16 %v698
        %v715 = vunpack.c.l.bf16 %v699
        %v716 = vunpack.c.l.bf16 %v700
        %v717 = vunpack.c.l.bf16 %v701
        %v718 = vunpack.c.l.bf16 %v702
        %v719 = vunpack.c.l.bf16 %v703
        %v720 = vunpack.c.l.bf16 %v704
        %v721 = vunpack.c.l.bf16 %v705
        %v722 = vunpack.c.l.bf16 %v706
        %v723 = vunpack.c.l.bf16 %v707
        %v724 = vunpack.c.l.bf16 %v708
        %v725 = vmax.f32 %v661, %v709
        %v726 = vmax.f32 %v662, %v710
        %v727 = vmax.f32 %v663, %v711
        %v728 = vmax.f32 %v664, %v712
        %v729 = vmax.f32 %v665, %v713
        %v730 = vmax.f32 %v666, %v714
        %v731 = vmax.f32 %v667, %v715
        %v732 = vmax.f32 %v668, %v716
        %v733 = vmax.f32 %v669, %v717
        %v734 = vmax.f32 %v670, %v718
        %v735 = vmax.f32 %v671, %v719
        %v736 = vmax.f32 %v672, %v720
        %v737 = vmax.f32 %v673, %v721
        %v738 = vmax.f32 %v674, %v722
        %v739 = vmax.f32 %v675, %v723
        %v740 = vmax.f32 %v676, %v724
        %v741 = vpack.c.bf16 %v726, %v725
        %v742 = vpack.c.bf16 %v728, %v727
        %v743 = vpack.c.bf16 %v730, %v729
        %v744 = vpack.c.bf16 %v732, %v731
        %v745 = vpack.c.bf16 %v734, %v733
        %v746 = vpack.c.bf16 %v736, %v735
        %v747 = vpack.c.bf16 %v738, %v737
        %v748 = vpack.c.bf16 %v740, %v739
        %v749 = vld [vmem:[%s3] sm:$0xf]
        %v750 = vld [vmem:[%s3 + $0x4] sm:$0xf]
        %v751 = vld [vmem:[%s3 + $0x8] sm:$0xf]
        %v752 = vld [vmem:[%s3 + $0xc] sm:$0xf]
        %v753 = vld [vmem:[%s3 + $0x10] sm:$0xf]
        %v754 = vld [vmem:[%s3 + $0x14] sm:$0xf]
        %v755 = vld [vmem:[%s3 + $0x18] sm:$0xf]
        %v756 = vld [vmem:[%s3 + $0x1c] sm:$0xf]
        %v757 = vld [vmem:[%s3 + $0x20] sm:$0xf]
        %v758 = vld [vmem:[%s3 + $0x24] sm:$0xf]
        %v759 = vld [vmem:[%s3 + $0x28] sm:$0xf]
        %v760 = vld [vmem:[%s3 + $0x2c] sm:$0xf]
        %v761 = vld [vmem:[%s3 + $0x30] sm:$0xf]
        %v762 = vld [vmem:[%s3 + $0x34] sm:$0xf]
        %v763 = vld [vmem:[%s3 + $0x38] sm:$0xf]
        %v764 = vld [vmem:[%s3 + $0x3c] sm:$0xf]
        %v781 = vunpack.c.l.b16 %v749
        %v782 = vunpack.c.l.b16 %v750
        %v783 = vunpack.c.l.b16 %v751
        %v784 = vunpack.c.l.b16 %v752
        %v785 = vunpack.c.l.b16 %v753
        %v786 = vunpack.c.l.b16 %v754
        %v787 = vunpack.c.l.b16 %v755
        %v788 = vunpack.c.l.b16 %v756
        %v789 = vunpack.c.l.b16 %v757
        %v790 = vunpack.c.l.b16 %v758
        %v791 = vunpack.c.l.b16 %v759
        %v792 = vunpack.c.l.b16 %v760
        %v793 = vunpack.c.l.b16 %v761
        %v794 = vunpack.c.l.b16 %v762
        %v795 = vunpack.c.l.b16 %v763
        %v796 = vunpack.c.l.b16 %v764
        %v797 = vpack.c.b16 %v782, %v781
        %v798 = vpack.c.b16 %v784, %v783
        %v799 = vpack.c.b16 %v786, %v785
        %v800 = vpack.c.b16 %v788, %v787
        %v801 = vpack.c.b16 %v790, %v789
        %v802 = vpack.c.b16 %v792, %v791
        %v803 = vpack.c.b16 %v794, %v793
        %v804 = vpack.c.b16 %v796, %v795
        %813 = vmatpush.bf16.msra.mxu0 %v804
        %814 = vmatpush.bf16.msra.mxu0 %v803
        %815 = vmatpush.bf16.msra.mxu0 %v802
        %816 = vmatpush.bf16.msra.mxu0 %v801
        %817 = vmatpush.bf16.msra.mxu0 %v800
        %818 = vmatpush.bf16.msra.mxu0 %v799
        %819 = vmatpush.bf16.msra.mxu0 %v798
        %820 = vmatpush.bf16.msra.mxu0 %v797
        %821 = vmatmul.bf16.gmra.mxu0 %v741
        %v822 = vpop.f32.mrf.mxu0
        %v823 = vadd.f32 0.0, %v822
        %v824 = vpop.f32.mrf.mxu0
        %v825 = vadd.f32 0.0, %v824
        %826 = vmatmul.bf16.gmra.mxu0 %v742
        %v827 = vpop.f32.mrf.mxu0
        %v828 = vadd.f32 0.0, %v827
        %v829 = vpop.f32.mrf.mxu0
        %v830 = vadd.f32 0.0, %v829
        %831 = vmatmul.bf16.gmra.mxu0 %v743
        %v832 = vpop.f32.mrf.mxu0
        %v833 = vadd.f32 0.0, %v832
        %v834 = vpop.f32.mrf.mxu0
        %v835 = vadd.f32 0.0, %v834
        %836 = vmatmul.bf16.gmra.mxu0 %v744
        %v837 = vpop.f32.mrf.mxu0
        %v838 = vadd.f32 0.0, %v837
        %v839 = vpop.f32.mrf.mxu0
        %v840 = vadd.f32 0.0, %v839
        %841 = vmatmul.bf16.gmra.mxu0 %v745
        %v842 = vpop.f32.mrf.mxu0
        %v843 = vadd.f32 0.0, %v842
        %v844 = vpop.f32.mrf.mxu0
        %v845 = vadd.f32 0.0, %v844
        %846 = vmatmul.bf16.gmra.mxu0 %v746
        %v847 = vpop.f32.mrf.mxu0
        %v848 = vadd.f32 0.0, %v847
        %v849 = vpop.f32.mrf.mxu0
        %v850 = vadd.f32 0.0, %v849
        %851 = vmatmul.bf16.gmra.mxu0 %v747
        %v852 = vpop.f32.mrf.mxu0
        %v853 = vadd.f32 0.0, %v852
        %v854 = vpop.f32.mrf.mxu0
        %v855 = vadd.f32 0.0, %v854
        %856 = vmatmul.bf16.gmra.mxu0 %v748
        %v857 = vpop.f32.mrf.mxu0
        %v858 = vadd.f32 0.0, %v857
        %v859 = vpop.f32.mrf.mxu0
        %v860 = vadd.f32 0.0, %v859
        %861 = vdwg.mxu0
        %v862 = vpack.c.bf16 %v823, %v823
        %v863 = vpack.c.bf16 %v825, %v825
        %v864 = vpack.c.bf16 %v828, %v828
        %v865 = vpack.c.bf16 %v830, %v830
        %v866 = vpack.c.bf16 %v833, %v833
        %v867 = vpack.c.bf16 %v835, %v835
        %v868 = vpack.c.bf16 %v838, %v838
        %v869 = vpack.c.bf16 %v840, %v840
        %v870 = vpack.c.bf16 %v843, %v843
        %v871 = vpack.c.bf16 %v845, %v845
        %v872 = vpack.c.bf16 %v848, %v848
        %v873 = vpack.c.bf16 %v850, %v850
        %v874 = vpack.c.bf16 %v853, %v853
        %v875 = vpack.c.bf16 %v855, %v855
        %v876 = vpack.c.bf16 %v858, %v858
        %v877 = vpack.c.bf16 %v860, %v860
        %v878 = vld [vmem:[%s4] sm:$0x1]
        %v880 = vpack.i.b16 %v878, %v878
        %v882 = vperm.slane %v880, 0
        %v883 = vunpack.c.l.bf16 %v862
        %v884 = vunpack.c.l.bf16 %v863
        %v885 = vunpack.c.l.bf16 %v864
        %v886 = vunpack.c.l.bf16 %v865
        %v887 = vunpack.c.l.bf16 %v866
        %v888 = vunpack.c.l.bf16 %v867
        %v889 = vunpack.c.l.bf16 %v868
        %v890 = vunpack.c.l.bf16 %v869
        %v891 = vunpack.c.l.bf16 %v870
        %v892 = vunpack.c.l.bf16 %v871
        %v893 = vunpack.c.l.bf16 %v872
        %v894 = vunpack.c.l.bf16 %v873
        %v895 = vunpack.c.l.bf16 %v874
        %v896 = vunpack.c.l.bf16 %v875
        %v897 = vunpack.c.l.bf16 %v876
        %v898 = vunpack.c.l.bf16 %v877
        %v899 = vunpack.c.l.bf16 %v882
        %v900 = vadd.f32 %v883, %v899
        %v901 = vadd.f32 %v884, %v899
        %v902 = vadd.f32 %v885, %v899
        %v903 = vadd.f32 %v886, %v899
        %v904 = vadd.f32 %v887, %v899
        %v905 = vadd.f32 %v888, %v899
        %v906 = vadd.f32 %v889, %v899
        %v907 = vadd.f32 %v890, %v899
        %v908 = vadd.f32 %v891, %v899
        %v909 = vadd.f32 %v892, %v899
        %v910 = vadd.f32 %v893, %v899
        %v911 = vadd.f32 %v894, %v899
        %v912 = vadd.f32 %v895, %v899
        %v913 = vadd.f32 %v896, %v899
        %v914 = vadd.f32 %v897, %v899
        %v915 = vadd.f32 %v898, %v899
        %v916 = vpack.c.bf16 %v900, %v900
        %v917 = vpack.c.bf16 %v901, %v901
        %v918 = vpack.c.bf16 %v902, %v902
        %v919 = vpack.c.bf16 %v903, %v903
        %v920 = vpack.c.bf16 %v904, %v904
        %v921 = vpack.c.bf16 %v905, %v905
        %v922 = vpack.c.bf16 %v906, %v906
        %v923 = vpack.c.bf16 %v907, %v907
        %v924 = vpack.c.bf16 %v908, %v908
        %v925 = vpack.c.bf16 %v909, %v909
        %v926 = vpack.c.bf16 %v910, %v910
        %v927 = vpack.c.bf16 %v911, %v911
        %v928 = vpack.c.bf16 %v912, %v912
        %v929 = vpack.c.bf16 %v913, %v913
        %v930 = vpack.c.bf16 %v914, %v914
        %v931 = vpack.c.bf16 %v915, %v915
        %v932 = vunpack.c.l.bf16 %v916
        %v933 = vunpack.c.l.bf16 %v917
        %v934 = vunpack.c.l.bf16 %v918
        %v935 = vunpack.c.l.bf16 %v919
        %v936 = vunpack.c.l.bf16 %v920
        %v937 = vunpack.c.l.bf16 %v921
        %v938 = vunpack.c.l.bf16 %v922
        %v939 = vunpack.c.l.bf16 %v923
        %v940 = vunpack.c.l.bf16 %v924
        %v941 = vunpack.c.l.bf16 %v925
        %v942 = vunpack.c.l.bf16 %v926
        %v943 = vunpack.c.l.bf16 %v927
        %v944 = vunpack.c.l.bf16 %v928
        %v945 = vunpack.c.l.bf16 %v929
        %v946 = vunpack.c.l.bf16 %v930
        %v947 = vunpack.c.l.bf16 %v931
        %v948 = vmul.f32 %v932, 0.010009766
        %v949 = vmul.f32 %v933, 0.010009766
        %v950 = vmul.f32 %v934, 0.010009766
        %v951 = vmul.f32 %v935, 0.010009766
        %v952 = vmul.f32 %v936, 0.010009766
        %v953 = vmul.f32 %v937, 0.010009766
        %v954 = vmul.f32 %v938, 0.010009766
        %v955 = vmul.f32 %v939, 0.010009766
        %v956 = vmul.f32 %v940, 0.010009766
        %v957 = vmul.f32 %v941, 0.010009766
        %v958 = vmul.f32 %v942, 0.010009766
        %v959 = vmul.f32 %v943, 0.010009766
        %v960 = vmul.f32 %v944, 0.010009766
        %v961 = vmul.f32 %v945, 0.010009766
        %v962 = vmul.f32 %v946, 0.010009766
        %v963 = vmul.f32 %v947, 0.010009766
        %v964 = vpack.c.bf16 %v948, %v948
        %v965 = vpack.c.bf16 %v949, %v949
        %v966 = vpack.c.bf16 %v950, %v950
        %v967 = vpack.c.bf16 %v951, %v951
        %v968 = vpack.c.bf16 %v952, %v952
        %v969 = vpack.c.bf16 %v953, %v953
        %v970 = vpack.c.bf16 %v954, %v954
        %v971 = vpack.c.bf16 %v955, %v955
        %v972 = vpack.c.bf16 %v956, %v956
        %v973 = vpack.c.bf16 %v957, %v957
        %v974 = vpack.c.bf16 %v958, %v958
        %v975 = vpack.c.bf16 %v959, %v959
        %v976 = vpack.c.bf16 %v960, %v960
        %v977 = vpack.c.bf16 %v961, %v961
        %v978 = vpack.c.bf16 %v962, %v962
        %v979 = vpack.c.bf16 %v963, %v963
        %v980 = vunpack.c.l.bf16 %v964
        %v981 = vunpack.c.l.bf16 %v965
        %v982 = vunpack.c.l.bf16 %v966
        %v983 = vunpack.c.l.bf16 %v967
        %v984 = vunpack.c.l.bf16 %v968
        %v985 = vunpack.c.l.bf16 %v969
        %v986 = vunpack.c.l.bf16 %v970
        %v987 = vunpack.c.l.bf16 %v971
        %v988 = vunpack.c.l.bf16 %v972
        %v989 = vunpack.c.l.bf16 %v973
        %v990 = vunpack.c.l.bf16 %v974
        %v991 = vunpack.c.l.bf16 %v975
        %v992 = vunpack.c.l.bf16 %v976
        %v993 = vunpack.c.l.bf16 %v977
        %v994 = vunpack.c.l.bf16 %v978
        %v995 = vunpack.c.l.bf16 %v979
        %v996 = vmax.f32 %v932, %v980
        %v997 = vmax.f32 %v933, %v981
        %v998 = vmax.f32 %v934, %v982
        %v999 = vmax.f32 %v935, %v983
        %v1000 = vmax.f32 %v936, %v984
        %v1001 = vmax.f32 %v937, %v985
        %v1002 = vmax.f32 %v938, %v986
        %v1003 = vmax.f32 %v939, %v987
        %v1004 = vmax.f32 %v940, %v988
        %v1005 = vmax.f32 %v941, %v989
        %v1006 = vmax.f32 %v942, %v990
        %v1007 = vmax.f32 %v943, %v991
        %v1008 = vmax.f32 %v944, %v992
        %v1009 = vmax.f32 %v945, %v993
        %v1010 = vmax.f32 %v946, %v994
        %v1011 = vmax.f32 %v947, %v995
        %v1012 = vpack.c.bf16 %v997, %v996
        %v1013 = vpack.c.bf16 %v999, %v998
        %v1014 = vpack.c.bf16 %v1001, %v1000
        %v1015 = vpack.c.bf16 %v1003, %v1002
        %v1016 = vpack.c.bf16 %v1005, %v1004
        %v1017 = vpack.c.bf16 %v1007, %v1006
        %v1018 = vpack.c.bf16 %v1009, %v1008
        %v1019 = vpack.c.bf16 %v1011, %v1010
        %v1020 = vld [vmem:[%s5] sm:$0xf]
        %v1021 = vld [vmem:[%s5 + $0x4] sm:$0xf]
        %v1022 = vld [vmem:[%s5 + $0x8] sm:$0xf]
        %v1023 = vld [vmem:[%s5 + $0xc] sm:$0xf]
        %v1024 = vld [vmem:[%s5 + $0x10] sm:$0xf]
        %v1025 = vld [vmem:[%s5 + $0x14] sm:$0xf]
        %v1026 = vld [vmem:[%s5 + $0x18] sm:$0xf]
        %v1027 = vld [vmem:[%s5 + $0x1c] sm:$0xf]
        %v1028 = vld [vmem:[%s5 + $0x20] sm:$0xf]
        %v1029 = vld [vmem:[%s5 + $0x24] sm:$0xf]
        %v1030 = vld [vmem:[%s5 + $0x28] sm:$0xf]
        %v1031 = vld [vmem:[%s5 + $0x2c] sm:$0xf]
        %v1032 = vld [vmem:[%s5 + $0x30] sm:$0xf]
        %v1033 = vld [vmem:[%s5 + $0x34] sm:$0xf]
        %v1034 = vld [vmem:[%s5 + $0x38] sm:$0xf]
        %v1035 = vld [vmem:[%s5 + $0x3c] sm:$0xf]
        %v1052 = vunpack.c.l.b16 %v1020
        %v1053 = vunpack.c.l.b16 %v1021
        %v1054 = vunpack.c.l.b16 %v1022
        %v1055 = vunpack.c.l.b16 %v1023
        %v1056 = vunpack.c.l.b16 %v1024
        %v1057 = vunpack.c.l.b16 %v1025
        %v1058 = vunpack.c.l.b16 %v1026
        %v1059 = vunpack.c.l.b16 %v1027
        %v1060 = vunpack.c.l.b16 %v1028
        %v1061 = vunpack.c.l.b16 %v1029
        %v1062 = vunpack.c.l.b16 %v1030
        %v1063 = vunpack.c.l.b16 %v1031
        %v1064 = vunpack.c.l.b16 %v1032
        %v1065 = vunpack.c.l.b16 %v1033
        %v1066 = vunpack.c.l.b16 %v1034
        %v1067 = vunpack.c.l.b16 %v1035
        %v1068 = vpack.c.b16 %v1053, %v1052
        %v1069 = vpack.c.b16 %v1055, %v1054
        %v1070 = vpack.c.b16 %v1057, %v1056
        %v1071 = vpack.c.b16 %v1059, %v1058
        %v1072 = vpack.c.b16 %v1061, %v1060
        %v1073 = vpack.c.b16 %v1063, %v1062
        %v1074 = vpack.c.b16 %v1065, %v1064
        %v1075 = vpack.c.b16 %v1067, %v1066
        %1084 = vmatpush.bf16.msra.mxu0 %v1075
        %1085 = vmatpush.bf16.msra.mxu0 %v1074
        %1086 = vmatpush.bf16.msra.mxu0 %v1073
        %1087 = vmatpush.bf16.msra.mxu0 %v1072
        %1088 = vmatpush.bf16.msra.mxu0 %v1071
        %1089 = vmatpush.bf16.msra.mxu0 %v1070
        %1090 = vmatpush.bf16.msra.mxu0 %v1069
        %1091 = vmatpush.bf16.msra.mxu0 %v1068
        %1092 = vmatmul.bf16.gmra.mxu0 %v1012
        %v1093 = vpop.f32.mrf.mxu0
        %v1094 = vadd.f32 0.0, %v1093
        %v1095 = vpop.f32.mrf.mxu0
        %v1096 = vadd.f32 0.0, %v1095
        %1097 = vmatmul.bf16.gmra.mxu0 %v1013
        %v1098 = vpop.f32.mrf.mxu0
        %v1099 = vadd.f32 0.0, %v1098
        %v1100 = vpop.f32.mrf.mxu0
        %v1101 = vadd.f32 0.0, %v1100
        %1102 = vmatmul.bf16.gmra.mxu0 %v1014
        %v1103 = vpop.f32.mrf.mxu0
        %v1104 = vadd.f32 0.0, %v1103
        %v1105 = vpop.f32.mrf.mxu0
        %v1106 = vadd.f32 0.0, %v1105
        %1107 = vmatmul.bf16.gmra.mxu0 %v1015
        %v1108 = vpop.f32.mrf.mxu0
        %v1109 = vadd.f32 0.0, %v1108
        %v1110 = vpop.f32.mrf.mxu0
        %v1111 = vadd.f32 0.0, %v1110
        %1112 = vmatmul.bf16.gmra.mxu0 %v1016
        %v1113 = vpop.f32.mrf.mxu0
        %v1114 = vadd.f32 0.0, %v1113
        %v1115 = vpop.f32.mrf.mxu0
        %v1116 = vadd.f32 0.0, %v1115
        %1117 = vmatmul.bf16.gmra.mxu0 %v1017
        %v1118 = vpop.f32.mrf.mxu0
        %v1119 = vadd.f32 0.0, %v1118
        %v1120 = vpop.f32.mrf.mxu0
        %v1121 = vadd.f32 0.0, %v1120
        %1122 = vmatmul.bf16.gmra.mxu0 %v1018
        %v1123 = vpop.f32.mrf.mxu0
        %v1124 = vadd.f32 0.0, %v1123
        %v1125 = vpop.f32.mrf.mxu0
        %v1126 = vadd.f32 0.0, %v1125
        %1127 = vmatmul.bf16.gmra.mxu0 %v1019
        %v1128 = vpop.f32.mrf.mxu0
        %v1129 = vadd.f32 0.0, %v1128
        %v1130 = vpop.f32.mrf.mxu0
        %v1131 = vadd.f32 0.0, %v1130
        %1132 = vdwg.mxu0
        %v1133 = vpack.c.bf16 %v1094, %v1094
        %v1134 = vpack.c.bf16 %v1096, %v1096
        %v1135 = vpack.c.bf16 %v1099, %v1099
        %v1136 = vpack.c.bf16 %v1101, %v1101
        %v1137 = vpack.c.bf16 %v1104, %v1104
        %v1138 = vpack.c.bf16 %v1106, %v1106
        %v1139 = vpack.c.bf16 %v1109, %v1109
        %v1140 = vpack.c.bf16 %v1111, %v1111
        %v1141 = vpack.c.bf16 %v1114, %v1114
        %v1142 = vpack.c.bf16 %v1116, %v1116
        %v1143 = vpack.c.bf16 %v1119, %v1119
        %v1144 = vpack.c.bf16 %v1121, %v1121
        %v1145 = vpack.c.bf16 %v1124, %v1124
        %v1146 = vpack.c.bf16 %v1126, %v1126
        %v1147 = vpack.c.bf16 %v1129, %v1129
        %v1148 = vpack.c.bf16 %v1131, %v1131
        %v1149 = vld [vmem:[%s6] sm:$0x1]
        %v1151 = vpack.i.b16 %v1149, %v1149
        %v1153 = vperm.slane %v1151, 0
        %v1154 = vunpack.c.l.bf16 %v1133
        %v1155 = vunpack.c.l.bf16 %v1134
        %v1156 = vunpack.c.l.bf16 %v1135
        %v1157 = vunpack.c.l.bf16 %v1136
        %v1158 = vunpack.c.l.bf16 %v1137
        %v1159 = vunpack.c.l.bf16 %v1138
        %v1160 = vunpack.c.l.bf16 %v1139
        %v1161 = vunpack.c.l.bf16 %v1140
        %v1162 = vunpack.c.l.bf16 %v1141
        %v1163 = vunpack.c.l.bf16 %v1142
        %v1164 = vunpack.c.l.bf16 %v1143
        %v1165 = vunpack.c.l.bf16 %v1144
        %v1166 = vunpack.c.l.bf16 %v1145
        %v1167 = vunpack.c.l.bf16 %v1146
        %v1168 = vunpack.c.l.bf16 %v1147
        %v1169 = vunpack.c.l.bf16 %v1148
        %v1170 = vunpack.c.l.bf16 %v1153
        %v1171 = vadd.f32 %v1154, %v1170
        %v1172 = vadd.f32 %v1155, %v1170
        %v1173 = vadd.f32 %v1156, %v1170
        %v1174 = vadd.f32 %v1157, %v1170
        %v1175 = vadd.f32 %v1158, %v1170
        %v1176 = vadd.f32 %v1159, %v1170
        %v1177 = vadd.f32 %v1160, %v1170
        %v1178 = vadd.f32 %v1161, %v1170
        %v1179 = vadd.f32 %v1162, %v1170
        %v1180 = vadd.f32 %v1163, %v1170
        %v1181 = vadd.f32 %v1164, %v1170
        %v1182 = vadd.f32 %v1165, %v1170
        %v1183 = vadd.f32 %v1166, %v1170
        %v1184 = vadd.f32 %v1167, %v1170
        %v1185 = vadd.f32 %v1168, %v1170
        %v1186 = vadd.f32 %v1169, %v1170
        %v1187 = vpack.c.bf16 %v1171, %v1171
        %v1188 = vpack.c.bf16 %v1172, %v1172
        %v1189 = vpack.c.bf16 %v1173, %v1173
        %v1190 = vpack.c.bf16 %v1174, %v1174
        %v1191 = vpack.c.bf16 %v1175, %v1175
        %v1192 = vpack.c.bf16 %v1176, %v1176
        %v1193 = vpack.c.bf16 %v1177, %v1177
        %v1194 = vpack.c.bf16 %v1178, %v1178
        %v1195 = vpack.c.bf16 %v1179, %v1179
        %v1196 = vpack.c.bf16 %v1180, %v1180
        %v1197 = vpack.c.bf16 %v1181, %v1181
        %v1198 = vpack.c.bf16 %v1182, %v1182
        %v1199 = vpack.c.bf16 %v1183, %v1183
        %v1200 = vpack.c.bf16 %v1184, %v1184
        %v1201 = vpack.c.bf16 %v1185, %v1185
        %v1202 = vpack.c.bf16 %v1186, %v1186
        %v1203 = vunpack.c.l.bf16 %v1187
        %v1204 = vunpack.c.l.bf16 %v1188
        %v1205 = vunpack.c.l.bf16 %v1189
        %v1206 = vunpack.c.l.bf16 %v1190
        %v1207 = vunpack.c.l.bf16 %v1191
        %v1208 = vunpack.c.l.bf16 %v1192
        %v1209 = vunpack.c.l.bf16 %v1193
        %v1210 = vunpack.c.l.bf16 %v1194
        %v1211 = vunpack.c.l.bf16 %v1195
        %v1212 = vunpack.c.l.bf16 %v1196
        %v1213 = vunpack.c.l.bf16 %v1197
        %v1214 = vunpack.c.l.bf16 %v1198
        %v1215 = vunpack.c.l.bf16 %v1199
        %v1216 = vunpack.c.l.bf16 %v1200
        %v1217 = vunpack.c.l.bf16 %v1201
        %v1218 = vunpack.c.l.bf16 %v1202
        %v1219 = vmul.f32 %v1203, 0.010009766
        %v1220 = vmul.f32 %v1204, 0.010009766
        %v1221 = vmul.f32 %v1205, 0.010009766
        %v1222 = vmul.f32 %v1206, 0.010009766
        %v1223 = vmul.f32 %v1207, 0.010009766
        %v1224 = vmul.f32 %v1208, 0.010009766
        %v1225 = vmul.f32 %v1209, 0.010009766
        %v1226 = vmul.f32 %v1210, 0.010009766
        %v1227 = vmul.f32 %v1211, 0.010009766
        %v1228 = vmul.f32 %v1212, 0.010009766
        %v1229 = vmul.f32 %v1213, 0.010009766
        %v1230 = vmul.f32 %v1214, 0.010009766
        %v1231 = vmul.f32 %v1215, 0.010009766
        %v1232 = vmul.f32 %v1216, 0.010009766
        %v1233 = vmul.f32 %v1217, 0.010009766
        %v1234 = vmul.f32 %v1218, 0.010009766
        %v1235 = vpack.c.bf16 %v1219, %v1219
        %v1236 = vpack.c.bf16 %v1220, %v1220
        %v1237 = vpack.c.bf16 %v1221, %v1221
        %v1238 = vpack.c.bf16 %v1222, %v1222
        %v1239 = vpack.c.bf16 %v1223, %v1223
        %v1240 = vpack.c.bf16 %v1224, %v1224
        %v1241 = vpack.c.bf16 %v1225, %v1225
        %v1242 = vpack.c.bf16 %v1226, %v1226
        %v1243 = vpack.c.bf16 %v1227, %v1227
        %v1244 = vpack.c.bf16 %v1228, %v1228
        %v1245 = vpack.c.bf16 %v1229, %v1229
        %v1246 = vpack.c.bf16 %v1230, %v1230
        %v1247 = vpack.c.bf16 %v1231, %v1231
        %v1248 = vpack.c.bf16 %v1232, %v1232
        %v1249 = vpack.c.bf16 %v1233, %v1233
        %v1250 = vpack.c.bf16 %v1234, %v1234
        %v1251 = vunpack.c.l.bf16 %v1235
        %v1252 = vunpack.c.l.bf16 %v1236
        %v1253 = vunpack.c.l.bf16 %v1237
        %v1254 = vunpack.c.l.bf16 %v1238
        %v1255 = vunpack.c.l.bf16 %v1239
        %v1256 = vunpack.c.l.bf16 %v1240
        %v1257 = vunpack.c.l.bf16 %v1241
        %v1258 = vunpack.c.l.bf16 %v1242
        %v1259 = vunpack.c.l.bf16 %v1243
        %v1260 = vunpack.c.l.bf16 %v1244
        %v1261 = vunpack.c.l.bf16 %v1245
        %v1262 = vunpack.c.l.bf16 %v1246
        %v1263 = vunpack.c.l.bf16 %v1247
        %v1264 = vunpack.c.l.bf16 %v1248
        %v1265 = vunpack.c.l.bf16 %v1249
        %v1266 = vunpack.c.l.bf16 %v1250
        %v1267 = vmax.f32 %v1203, %v1251
        %v1268 = vmax.f32 %v1204, %v1252
        %v1269 = vmax.f32 %v1205, %v1253
        %v1270 = vmax.f32 %v1206, %v1254
        %v1271 = vmax.f32 %v1207, %v1255
        %v1272 = vmax.f32 %v1208, %v1256
        %v1273 = vmax.f32 %v1209, %v1257
        %v1274 = vmax.f32 %v1210, %v1258
        %v1275 = vmax.f32 %v1211, %v1259
        %v1276 = vmax.f32 %v1212, %v1260
        %v1277 = vmax.f32 %v1213, %v1261
        %v1278 = vmax.f32 %v1214, %v1262
        %v1279 = vmax.f32 %v1215, %v1263
        %v1280 = vmax.f32 %v1216, %v1264
        %v1281 = vmax.f32 %v1217, %v1265
        %v1282 = vmax.f32 %v1218, %v1266
        %v1283 = vpack.c.bf16 %v1268, %v1267
        %v1284 = vpack.c.bf16 %v1270, %v1269
        %v1285 = vpack.c.bf16 %v1272, %v1271
        %v1286 = vpack.c.bf16 %v1274, %v1273
        %v1287 = vpack.c.bf16 %v1276, %v1275
        %v1288 = vpack.c.bf16 %v1278, %v1277
        %v1289 = vpack.c.bf16 %v1280, %v1279
        %v1290 = vpack.c.bf16 %v1282, %v1281
        %v1291 = vld [vmem:[%s7] sm:$0xf]
        %v1292 = vld [vmem:[%s7 + $0x4] sm:$0xf]
        %v1293 = vld [vmem:[%s7 + $0x8] sm:$0xf]
        %v1294 = vld [vmem:[%s7 + $0xc] sm:$0xf]
        %v1295 = vld [vmem:[%s7 + $0x10] sm:$0xf]
        %v1296 = vld [vmem:[%s7 + $0x14] sm:$0xf]
        %v1297 = vld [vmem:[%s7 + $0x18] sm:$0xf]
        %v1298 = vld [vmem:[%s7 + $0x1c] sm:$0xf]
        %v1299 = vld [vmem:[%s7 + $0x20] sm:$0xf]
        %v1300 = vld [vmem:[%s7 + $0x24] sm:$0xf]
        %v1301 = vld [vmem:[%s7 + $0x28] sm:$0xf]
        %v1302 = vld [vmem:[%s7 + $0x2c] sm:$0xf]
        %v1303 = vld [vmem:[%s7 + $0x30] sm:$0xf]
        %v1304 = vld [vmem:[%s7 + $0x34] sm:$0xf]
        %v1305 = vld [vmem:[%s7 + $0x38] sm:$0xf]
        %v1306 = vld [vmem:[%s7 + $0x3c] sm:$0xf]
        %v1323 = vunpack.c.l.b16 %v1291
        %v1324 = vunpack.c.l.b16 %v1292
        %v1325 = vunpack.c.l.b16 %v1293
        %v1326 = vunpack.c.l.b16 %v1294
        %v1327 = vunpack.c.l.b16 %v1295
        %v1328 = vunpack.c.l.b16 %v1296
        %v1329 = vunpack.c.l.b16 %v1297
        %v1330 = vunpack.c.l.b16 %v1298
        %v1331 = vunpack.c.l.b16 %v1299
        %v1332 = vunpack.c.l.b16 %v1300
        %v1333 = vunpack.c.l.b16 %v1301
        %v1334 = vunpack.c.l.b16 %v1302
        %v1335 = vunpack.c.l.b16 %v1303
        %v1336 = vunpack.c.l.b16 %v1304
        %v1337 = vunpack.c.l.b16 %v1305
        %v1338 = vunpack.c.l.b16 %v1306
        %v1339 = vpack.c.b16 %v1324, %v1323
        %v1340 = vpack.c.b16 %v1326, %v1325
        %v1341 = vpack.c.b16 %v1328, %v1327
        %v1342 = vpack.c.b16 %v1330, %v1329
        %v1343 = vpack.c.b16 %v1332, %v1331
        %v1344 = vpack.c.b16 %v1334, %v1333
        %v1345 = vpack.c.b16 %v1336, %v1335
        %v1346 = vpack.c.b16 %v1338, %v1337
        %1355 = vmatpush.bf16.msra.mxu0 %v1346
        %1356 = vmatpush.bf16.msra.mxu0 %v1345
        %1357 = vmatpush.bf16.msra.mxu0 %v1344
        %1358 = vmatpush.bf16.msra.mxu0 %v1343
        %1359 = vmatpush.bf16.msra.mxu0 %v1342
        %1360 = vmatpush.bf16.msra.mxu0 %v1341
        %1361 = vmatpush.bf16.msra.mxu0 %v1340
        %1362 = vmatpush.bf16.msra.mxu0 %v1339
        %1363 = vmatmul.bf16.gmra.mxu0 %v1283
        %v1364 = vpop.f32.mrf.mxu0
        %v1365 = vadd.f32 0.0, %v1364
        %v1366 = vpop.f32.mrf.mxu0
        %v1367 = vadd.f32 0.0, %v1366
        %1368 = vmatmul.bf16.gmra.mxu0 %v1284
        %v1369 = vpop.f32.mrf.mxu0
        %v1370 = vadd.f32 0.0, %v1369
        %v1371 = vpop.f32.mrf.mxu0
        %v1372 = vadd.f32 0.0, %v1371
        %1373 = vmatmul.bf16.gmra.mxu0 %v1285
        %v1374 = vpop.f32.mrf.mxu0
        %v1375 = vadd.f32 0.0, %v1374
        %v1376 = vpop.f32.mrf.mxu0
        %v1377 = vadd.f32 0.0, %v1376
        %1378 = vmatmul.bf16.gmra.mxu0 %v1286
        %v1379 = vpop.f32.mrf.mxu0
        %v1380 = vadd.f32 0.0, %v1379
        %v1381 = vpop.f32.mrf.mxu0
        %v1382 = vadd.f32 0.0, %v1381
        %1383 = vmatmul.bf16.gmra.mxu0 %v1287
        %v1384 = vpop.f32.mrf.mxu0
        %v1385 = vadd.f32 0.0, %v1384
        %v1386 = vpop.f32.mrf.mxu0
        %v1387 = vadd.f32 0.0, %v1386
        %1388 = vmatmul.bf16.gmra.mxu0 %v1288
        %v1389 = vpop.f32.mrf.mxu0
        %v1390 = vadd.f32 0.0, %v1389
        %v1391 = vpop.f32.mrf.mxu0
        %v1392 = vadd.f32 0.0, %v1391
        %1393 = vmatmul.bf16.gmra.mxu0 %v1289
        %v1394 = vpop.f32.mrf.mxu0
        %v1395 = vadd.f32 0.0, %v1394
        %v1396 = vpop.f32.mrf.mxu0
        %v1397 = vadd.f32 0.0, %v1396
        %1398 = vmatmul.bf16.gmra.mxu0 %v1290
        %v1399 = vpop.f32.mrf.mxu0
        %v1400 = vadd.f32 0.0, %v1399
        %v1401 = vpop.f32.mrf.mxu0
        %v1402 = vadd.f32 0.0, %v1401
        %1403 = vdwg.mxu0
        %v1404 = vpack.c.bf16 %v1365, %v1365
        %v1405 = vpack.c.bf16 %v1367, %v1367
        %v1406 = vpack.c.bf16 %v1370, %v1370
        %v1407 = vpack.c.bf16 %v1372, %v1372
        %v1408 = vpack.c.bf16 %v1375, %v1375
        %v1409 = vpack.c.bf16 %v1377, %v1377
        %v1410 = vpack.c.bf16 %v1380, %v1380
        %v1411 = vpack.c.bf16 %v1382, %v1382
        %v1412 = vpack.c.bf16 %v1385, %v1385
        %v1413 = vpack.c.bf16 %v1387, %v1387
        %v1414 = vpack.c.bf16 %v1390, %v1390
        %v1415 = vpack.c.bf16 %v1392, %v1392
        %v1416 = vpack.c.bf16 %v1395, %v1395
        %v1417 = vpack.c.bf16 %v1397, %v1397
        %v1418 = vpack.c.bf16 %v1400, %v1400
        %v1419 = vpack.c.bf16 %v1402, %v1402
        %v1420 = vld [vmem:[%s8] sm:$0x1]
        %v1422 = vpack.i.b16 %v1420, %v1420
        %v1424 = vperm.slane %v1422, 0
        %v1425 = vunpack.c.l.bf16 %v1404
        %v1426 = vunpack.c.l.bf16 %v1405
        %v1427 = vunpack.c.l.bf16 %v1406
        %v1428 = vunpack.c.l.bf16 %v1407
        %v1429 = vunpack.c.l.bf16 %v1408
        %v1430 = vunpack.c.l.bf16 %v1409
        %v1431 = vunpack.c.l.bf16 %v1410
        %v1432 = vunpack.c.l.bf16 %v1411
        %v1433 = vunpack.c.l.bf16 %v1412
        %v1434 = vunpack.c.l.bf16 %v1413
        %v1435 = vunpack.c.l.bf16 %v1414
        %v1436 = vunpack.c.l.bf16 %v1415
        %v1437 = vunpack.c.l.bf16 %v1416
        %v1438 = vunpack.c.l.bf16 %v1417
        %v1439 = vunpack.c.l.bf16 %v1418
        %v1440 = vunpack.c.l.bf16 %v1419
        %v1441 = vunpack.c.l.bf16 %v1424
        %v1442 = vadd.f32 %v1425, %v1441
        %v1443 = vadd.f32 %v1426, %v1441
        %v1444 = vadd.f32 %v1427, %v1441
        %v1445 = vadd.f32 %v1428, %v1441
        %v1446 = vadd.f32 %v1429, %v1441
        %v1447 = vadd.f32 %v1430, %v1441
        %v1448 = vadd.f32 %v1431, %v1441
        %v1449 = vadd.f32 %v1432, %v1441
        %v1450 = vadd.f32 %v1433, %v1441
        %v1451 = vadd.f32 %v1434, %v1441
        %v1452 = vadd.f32 %v1435, %v1441
        %v1453 = vadd.f32 %v1436, %v1441
        %v1454 = vadd.f32 %v1437, %v1441
        %v1455 = vadd.f32 %v1438, %v1441
        %v1456 = vadd.f32 %v1439, %v1441
        %v1457 = vadd.f32 %v1440, %v1441
        %v1458 = vpack.c.bf16 %v1442, %v1442
        %v1459 = vpack.c.bf16 %v1443, %v1443
        %v1460 = vpack.c.bf16 %v1444, %v1444
        %v1461 = vpack.c.bf16 %v1445, %v1445
        %v1462 = vpack.c.bf16 %v1446, %v1446
        %v1463 = vpack.c.bf16 %v1447, %v1447
        %v1464 = vpack.c.bf16 %v1448, %v1448
        %v1465 = vpack.c.bf16 %v1449, %v1449
        %v1466 = vpack.c.bf16 %v1450, %v1450
        %v1467 = vpack.c.bf16 %v1451, %v1451
        %v1468 = vpack.c.bf16 %v1452, %v1452
        %v1469 = vpack.c.bf16 %v1453, %v1453
        %v1470 = vpack.c.bf16 %v1454, %v1454
        %v1471 = vpack.c.bf16 %v1455, %v1455
        %v1472 = vpack.c.bf16 %v1456, %v1456
        %v1473 = vpack.c.bf16 %v1457, %v1457
        %v1474 = vunpack.c.l.bf16 %v1458
        %v1475 = vunpack.c.l.bf16 %v1459
        %v1476 = vunpack.c.l.bf16 %v1460
        %v1477 = vunpack.c.l.bf16 %v1461
        %v1478 = vunpack.c.l.bf16 %v1462
        %v1479 = vunpack.c.l.bf16 %v1463
        %v1480 = vunpack.c.l.bf16 %v1464
        %v1481 = vunpack.c.l.bf16 %v1465
        %v1482 = vunpack.c.l.bf16 %v1466
        %v1483 = vunpack.c.l.bf16 %v1467
        %v1484 = vunpack.c.l.bf16 %v1468
        %v1485 = vunpack.c.l.bf16 %v1469
        %v1486 = vunpack.c.l.bf16 %v1470
        %v1487 = vunpack.c.l.bf16 %v1471
        %v1488 = vunpack.c.l.bf16 %v1472
        %v1489 = vunpack.c.l.bf16 %v1473
        %v1490 = vmul.f32 %v1474, 0.010009766
        %v1491 = vmul.f32 %v1475, 0.010009766
        %v1492 = vmul.f32 %v1476, 0.010009766
        %v1493 = vmul.f32 %v1477, 0.010009766
        %v1494 = vmul.f32 %v1478, 0.010009766
        %v1495 = vmul.f32 %v1479, 0.010009766
        %v1496 = vmul.f32 %v1480, 0.010009766
        %v1497 = vmul.f32 %v1481, 0.010009766
        %v1498 = vmul.f32 %v1482, 0.010009766
        %v1499 = vmul.f32 %v1483, 0.010009766
        %v1500 = vmul.f32 %v1484, 0.010009766
        %v1501 = vmul.f32 %v1485, 0.010009766
        %v1502 = vmul.f32 %v1486, 0.010009766
        %v1503 = vmul.f32 %v1487, 0.010009766
        %v1504 = vmul.f32 %v1488, 0.010009766
        %v1505 = vmul.f32 %v1489, 0.010009766
        %v1506 = vpack.c.bf16 %v1490, %v1490
        %v1507 = vpack.c.bf16 %v1491, %v1491
        %v1508 = vpack.c.bf16 %v1492, %v1492
        %v1509 = vpack.c.bf16 %v1493, %v1493
        %v1510 = vpack.c.bf16 %v1494, %v1494
        %v1511 = vpack.c.bf16 %v1495, %v1495
        %v1512 = vpack.c.bf16 %v1496, %v1496
        %v1513 = vpack.c.bf16 %v1497, %v1497
        %v1514 = vpack.c.bf16 %v1498, %v1498
        %v1515 = vpack.c.bf16 %v1499, %v1499
        %v1516 = vpack.c.bf16 %v1500, %v1500
        %v1517 = vpack.c.bf16 %v1501, %v1501
        %v1518 = vpack.c.bf16 %v1502, %v1502
        %v1519 = vpack.c.bf16 %v1503, %v1503
        %v1520 = vpack.c.bf16 %v1504, %v1504
        %v1521 = vpack.c.bf16 %v1505, %v1505
        %v1522 = vunpack.c.l.bf16 %v1506
        %v1523 = vunpack.c.l.bf16 %v1507
        %v1524 = vunpack.c.l.bf16 %v1508
        %v1525 = vunpack.c.l.bf16 %v1509
        %v1526 = vunpack.c.l.bf16 %v1510
        %v1527 = vunpack.c.l.bf16 %v1511
        %v1528 = vunpack.c.l.bf16 %v1512
        %v1529 = vunpack.c.l.bf16 %v1513
        %v1530 = vunpack.c.l.bf16 %v1514
        %v1531 = vunpack.c.l.bf16 %v1515
        %v1532 = vunpack.c.l.bf16 %v1516
        %v1533 = vunpack.c.l.bf16 %v1517
        %v1534 = vunpack.c.l.bf16 %v1518
        %v1535 = vunpack.c.l.bf16 %v1519
        %v1536 = vunpack.c.l.bf16 %v1520
        %v1537 = vunpack.c.l.bf16 %v1521
        %v1538 = vmax.f32 %v1474, %v1522
        %v1539 = vmax.f32 %v1475, %v1523
        %v1540 = vmax.f32 %v1476, %v1524
        %v1541 = vmax.f32 %v1477, %v1525
        %v1542 = vmax.f32 %v1478, %v1526
        %v1543 = vmax.f32 %v1479, %v1527
        %v1544 = vmax.f32 %v1480, %v1528
        %v1545 = vmax.f32 %v1481, %v1529
        %v1546 = vmax.f32 %v1482, %v1530
        %v1547 = vmax.f32 %v1483, %v1531
        %v1548 = vmax.f32 %v1484, %v1532
        %v1549 = vmax.f32 %v1485, %v1533
        %v1550 = vmax.f32 %v1486, %v1534
        %v1551 = vmax.f32 %v1487, %v1535
        %v1552 = vmax.f32 %v1488, %v1536
        %v1553 = vmax.f32 %v1489, %v1537
        %v1554 = vpack.c.bf16 %v1539, %v1538
        %v1555 = vpack.c.bf16 %v1541, %v1540
        %v1556 = vpack.c.bf16 %v1543, %v1542
        %v1557 = vpack.c.bf16 %v1545, %v1544
        %v1558 = vpack.c.bf16 %v1547, %v1546
        %v1559 = vpack.c.bf16 %v1549, %v1548
        %v1560 = vpack.c.bf16 %v1551, %v1550
        %v1561 = vpack.c.bf16 %v1553, %v1552
        %v1562 = vld [vmem:[%s9] sm:$0xf]
        %v1563 = vld [vmem:[%s9 + $0x4] sm:$0xf]
        %v1564 = vld [vmem:[%s9 + $0x8] sm:$0xf]
        %v1565 = vld [vmem:[%s9 + $0xc] sm:$0xf]
        %v1566 = vld [vmem:[%s9 + $0x10] sm:$0xf]
        %v1567 = vld [vmem:[%s9 + $0x14] sm:$0xf]
        %v1568 = vld [vmem:[%s9 + $0x18] sm:$0xf]
        %v1569 = vld [vmem:[%s9 + $0x1c] sm:$0xf]
        %v1570 = vld [vmem:[%s9 + $0x20] sm:$0xf]
        %v1571 = vld [vmem:[%s9 + $0x24] sm:$0xf]
        %v1572 = vld [vmem:[%s9 + $0x28] sm:$0xf]
        %v1573 = vld [vmem:[%s9 + $0x2c] sm:$0xf]
        %v1574 = vld [vmem:[%s9 + $0x30] sm:$0xf]
        %v1575 = vld [vmem:[%s9 + $0x34] sm:$0xf]
        %v1576 = vld [vmem:[%s9 + $0x38] sm:$0xf]
        %v1577 = vld [vmem:[%s9 + $0x3c] sm:$0xf]
        %v1594 = vunpack.c.l.b16 %v1562
        %v1595 = vunpack.c.l.b16 %v1563
        %v1596 = vunpack.c.l.b16 %v1564
        %v1597 = vunpack.c.l.b16 %v1565
        %v1598 = vunpack.c.l.b16 %v1566
        %v1599 = vunpack.c.l.b16 %v1567
        %v1600 = vunpack.c.l.b16 %v1568
        %v1601 = vunpack.c.l.b16 %v1569
        %v1602 = vunpack.c.l.b16 %v1570
        %v1603 = vunpack.c.l.b16 %v1571
        %v1604 = vunpack.c.l.b16 %v1572
        %v1605 = vunpack.c.l.b16 %v1573
        %v1606 = vunpack.c.l.b16 %v1574
        %v1607 = vunpack.c.l.b16 %v1575
        %v1608 = vunpack.c.l.b16 %v1576
        %v1609 = vunpack.c.l.b16 %v1577
        %v1610 = vpack.c.b16 %v1595, %v1594
        %v1611 = vpack.c.b16 %v1597, %v1596
        %v1612 = vpack.c.b16 %v1599, %v1598
        %v1613 = vpack.c.b16 %v1601, %v1600
        %v1614 = vpack.c.b16 %v1603, %v1602
        %v1615 = vpack.c.b16 %v1605, %v1604
        %v1616 = vpack.c.b16 %v1607, %v1606
        %v1617 = vpack.c.b16 %v1609, %v1608
        %1626 = vmatpush.bf16.msra.mxu0 %v1617
        %1627 = vmatpush.bf16.msra.mxu0 %v1616
        %1628 = vmatpush.bf16.msra.mxu0 %v1615
        %1629 = vmatpush.bf16.msra.mxu0 %v1614
        %1630 = vmatpush.bf16.msra.mxu0 %v1613
        %1631 = vmatpush.bf16.msra.mxu0 %v1612
        %1632 = vmatpush.bf16.msra.mxu0 %v1611
        %1633 = vmatpush.bf16.msra.mxu0 %v1610
        %1634 = vmatmul.bf16.gmra.mxu0 %v1554
        %v1635 = vpop.f32.mrf.mxu0
        %v1636 = vadd.f32 0.0, %v1635
        %v1637 = vpop.f32.mrf.mxu0
        %v1638 = vadd.f32 0.0, %v1637
        %1639 = vmatmul.bf16.gmra.mxu0 %v1555
        %v1640 = vpop.f32.mrf.mxu0
        %v1641 = vadd.f32 0.0, %v1640
        %v1642 = vpop.f32.mrf.mxu0
        %v1643 = vadd.f32 0.0, %v1642
        %1644 = vmatmul.bf16.gmra.mxu0 %v1556
        %v1645 = vpop.f32.mrf.mxu0
        %v1646 = vadd.f32 0.0, %v1645
        %v1647 = vpop.f32.mrf.mxu0
        %v1648 = vadd.f32 0.0, %v1647
        %1649 = vmatmul.bf16.gmra.mxu0 %v1557
        %v1650 = vpop.f32.mrf.mxu0
        %v1651 = vadd.f32 0.0, %v1650
        %v1652 = vpop.f32.mrf.mxu0
        %v1653 = vadd.f32 0.0, %v1652
        %1654 = vmatmul.bf16.gmra.mxu0 %v1558
        %v1655 = vpop.f32.mrf.mxu0
        %v1656 = vadd.f32 0.0, %v1655
        %v1657 = vpop.f32.mrf.mxu0
        %v1658 = vadd.f32 0.0, %v1657
        %1659 = vmatmul.bf16.gmra.mxu0 %v1559
        %v1660 = vpop.f32.mrf.mxu0
        %v1661 = vadd.f32 0.0, %v1660
        %v1662 = vpop.f32.mrf.mxu0
        %v1663 = vadd.f32 0.0, %v1662
        %1664 = vmatmul.bf16.gmra.mxu0 %v1560
        %v1665 = vpop.f32.mrf.mxu0
        %v1666 = vadd.f32 0.0, %v1665
        %v1667 = vpop.f32.mrf.mxu0
        %v1668 = vadd.f32 0.0, %v1667
        %1669 = vmatmul.bf16.gmra.mxu0 %v1561
        %v1670 = vpop.f32.mrf.mxu0
        %v1671 = vadd.f32 0.0, %v1670
        %v1672 = vpop.f32.mrf.mxu0
        %v1673 = vadd.f32 0.0, %v1672
        %1674 = vdwg.mxu0
        %v1675 = vpack.c.bf16 %v1636, %v1636
        %v1676 = vpack.c.bf16 %v1638, %v1638
        %v1677 = vpack.c.bf16 %v1641, %v1641
        %v1678 = vpack.c.bf16 %v1643, %v1643
        %v1679 = vpack.c.bf16 %v1646, %v1646
        %v1680 = vpack.c.bf16 %v1648, %v1648
        %v1681 = vpack.c.bf16 %v1651, %v1651
        %v1682 = vpack.c.bf16 %v1653, %v1653
        %v1683 = vpack.c.bf16 %v1656, %v1656
        %v1684 = vpack.c.bf16 %v1658, %v1658
        %v1685 = vpack.c.bf16 %v1661, %v1661
        %v1686 = vpack.c.bf16 %v1663, %v1663
        %v1687 = vpack.c.bf16 %v1666, %v1666
        %v1688 = vpack.c.bf16 %v1668, %v1668
        %v1689 = vpack.c.bf16 %v1671, %v1671
        %v1690 = vpack.c.bf16 %v1673, %v1673
        %v1691 = vld [vmem:[%s10] sm:$0x1]
        %v1693 = vpack.i.b16 %v1691, %v1691
        %v1695 = vperm.slane %v1693, 0
        %v1696 = vunpack.c.l.bf16 %v1675
        %v1697 = vunpack.c.l.bf16 %v1676
        %v1698 = vunpack.c.l.bf16 %v1677
        %v1699 = vunpack.c.l.bf16 %v1678
        %v1700 = vunpack.c.l.bf16 %v1679
        %v1701 = vunpack.c.l.bf16 %v1680
        %v1702 = vunpack.c.l.bf16 %v1681
        %v1703 = vunpack.c.l.bf16 %v1682
        %v1704 = vunpack.c.l.bf16 %v1683
        %v1705 = vunpack.c.l.bf16 %v1684
        %v1706 = vunpack.c.l.bf16 %v1685
        %v1707 = vunpack.c.l.bf16 %v1686
        %v1708 = vunpack.c.l.bf16 %v1687
        %v1709 = vunpack.c.l.bf16 %v1688
        %v1710 = vunpack.c.l.bf16 %v1689
        %v1711 = vunpack.c.l.bf16 %v1690
        %v1712 = vunpack.c.l.bf16 %v1695
        %v1713 = vadd.f32 %v1696, %v1712
        %v1714 = vadd.f32 %v1697, %v1712
        %v1715 = vadd.f32 %v1698, %v1712
        %v1716 = vadd.f32 %v1699, %v1712
        %v1717 = vadd.f32 %v1700, %v1712
        %v1718 = vadd.f32 %v1701, %v1712
        %v1719 = vadd.f32 %v1702, %v1712
        %v1720 = vadd.f32 %v1703, %v1712
        %v1721 = vadd.f32 %v1704, %v1712
        %v1722 = vadd.f32 %v1705, %v1712
        %v1723 = vadd.f32 %v1706, %v1712
        %v1724 = vadd.f32 %v1707, %v1712
        %v1725 = vadd.f32 %v1708, %v1712
        %v1726 = vadd.f32 %v1709, %v1712
        %v1727 = vadd.f32 %v1710, %v1712
        %v1728 = vadd.f32 %v1711, %v1712
        %v1729 = vpack.c.bf16 %v1713, %v1713
        %v1730 = vpack.c.bf16 %v1714, %v1714
        %v1731 = vpack.c.bf16 %v1715, %v1715
        %v1732 = vpack.c.bf16 %v1716, %v1716
        %v1733 = vpack.c.bf16 %v1717, %v1717
        %v1734 = vpack.c.bf16 %v1718, %v1718
        %v1735 = vpack.c.bf16 %v1719, %v1719
        %v1736 = vpack.c.bf16 %v1720, %v1720
        %v1737 = vpack.c.bf16 %v1721, %v1721
        %v1738 = vpack.c.bf16 %v1722, %v1722
        %v1739 = vpack.c.bf16 %v1723, %v1723
        %v1740 = vpack.c.bf16 %v1724, %v1724
        %v1741 = vpack.c.bf16 %v1725, %v1725
        %v1742 = vpack.c.bf16 %v1726, %v1726
        %v1743 = vpack.c.bf16 %v1727, %v1727
        %v1744 = vpack.c.bf16 %v1728, %v1728
        %v1745 = vunpack.c.l.bf16 %v1729
        %v1746 = vunpack.c.l.bf16 %v1730
        %v1747 = vunpack.c.l.bf16 %v1731
        %v1748 = vunpack.c.l.bf16 %v1732
        %v1749 = vunpack.c.l.bf16 %v1733
        %v1750 = vunpack.c.l.bf16 %v1734
        %v1751 = vunpack.c.l.bf16 %v1735
        %v1752 = vunpack.c.l.bf16 %v1736
        %v1753 = vunpack.c.l.bf16 %v1737
        %v1754 = vunpack.c.l.bf16 %v1738
        %v1755 = vunpack.c.l.bf16 %v1739
        %v1756 = vunpack.c.l.bf16 %v1740
        %v1757 = vunpack.c.l.bf16 %v1741
        %v1758 = vunpack.c.l.bf16 %v1742
        %v1759 = vunpack.c.l.bf16 %v1743
        %v1760 = vunpack.c.l.bf16 %v1744
        %v1761 = vmul.f32 %v1745, 0.010009766
        %v1762 = vmul.f32 %v1746, 0.010009766
        %v1763 = vmul.f32 %v1747, 0.010009766
        %v1764 = vmul.f32 %v1748, 0.010009766
        %v1765 = vmul.f32 %v1749, 0.010009766
        %v1766 = vmul.f32 %v1750, 0.010009766
        %v1767 = vmul.f32 %v1751, 0.010009766
        %v1768 = vmul.f32 %v1752, 0.010009766
        %v1769 = vmul.f32 %v1753, 0.010009766
        %v1770 = vmul.f32 %v1754, 0.010009766
        %v1771 = vmul.f32 %v1755, 0.010009766
        %v1772 = vmul.f32 %v1756, 0.010009766
        %v1773 = vmul.f32 %v1757, 0.010009766
        %v1774 = vmul.f32 %v1758, 0.010009766
        %v1775 = vmul.f32 %v1759, 0.010009766
        %v1776 = vmul.f32 %v1760, 0.010009766
        %v1777 = vpack.c.bf16 %v1761, %v1761
        %v1778 = vpack.c.bf16 %v1762, %v1762
        %v1779 = vpack.c.bf16 %v1763, %v1763
        %v1780 = vpack.c.bf16 %v1764, %v1764
        %v1781 = vpack.c.bf16 %v1765, %v1765
        %v1782 = vpack.c.bf16 %v1766, %v1766
        %v1783 = vpack.c.bf16 %v1767, %v1767
        %v1784 = vpack.c.bf16 %v1768, %v1768
        %v1785 = vpack.c.bf16 %v1769, %v1769
        %v1786 = vpack.c.bf16 %v1770, %v1770
        %v1787 = vpack.c.bf16 %v1771, %v1771
        %v1788 = vpack.c.bf16 %v1772, %v1772
        %v1789 = vpack.c.bf16 %v1773, %v1773
        %v1790 = vpack.c.bf16 %v1774, %v1774
        %v1791 = vpack.c.bf16 %v1775, %v1775
        %v1792 = vpack.c.bf16 %v1776, %v1776
        %v1793 = vunpack.c.l.bf16 %v1777
        %v1794 = vunpack.c.l.bf16 %v1778
        %v1795 = vunpack.c.l.bf16 %v1779
        %v1796 = vunpack.c.l.bf16 %v1780
        %v1797 = vunpack.c.l.bf16 %v1781
        %v1798 = vunpack.c.l.bf16 %v1782
        %v1799 = vunpack.c.l.bf16 %v1783
        %v1800 = vunpack.c.l.bf16 %v1784
        %v1801 = vunpack.c.l.bf16 %v1785
        %v1802 = vunpack.c.l.bf16 %v1786
        %v1803 = vunpack.c.l.bf16 %v1787
        %v1804 = vunpack.c.l.bf16 %v1788
        %v1805 = vunpack.c.l.bf16 %v1789
        %v1806 = vunpack.c.l.bf16 %v1790
        %v1807 = vunpack.c.l.bf16 %v1791
        %v1808 = vunpack.c.l.bf16 %v1792
        %v1809 = vmax.f32 %v1745, %v1793
        %v1810 = vmax.f32 %v1746, %v1794
        %v1811 = vmax.f32 %v1747, %v1795
        %v1812 = vmax.f32 %v1748, %v1796
        %v1813 = vmax.f32 %v1749, %v1797
        %v1814 = vmax.f32 %v1750, %v1798
        %v1815 = vmax.f32 %v1751, %v1799
        %v1816 = vmax.f32 %v1752, %v1800
        %v1817 = vmax.f32 %v1753, %v1801
        %v1818 = vmax.f32 %v1754, %v1802
        %v1819 = vmax.f32 %v1755, %v1803
        %v1820 = vmax.f32 %v1756, %v1804
        %v1821 = vmax.f32 %v1757, %v1805
        %v1822 = vmax.f32 %v1758, %v1806
        %v1823 = vmax.f32 %v1759, %v1807
        %v1824 = vmax.f32 %v1760, %v1808
        %v1825 = vpack.c.bf16 %v1810, %v1809
        %v1826 = vpack.c.bf16 %v1812, %v1811
        %v1827 = vpack.c.bf16 %v1814, %v1813
        %v1828 = vpack.c.bf16 %v1816, %v1815
        %v1829 = vpack.c.bf16 %v1818, %v1817
        %v1830 = vpack.c.bf16 %v1820, %v1819
        %v1831 = vpack.c.bf16 %v1822, %v1821
        %v1832 = vpack.c.bf16 %v1824, %v1823
        %v1833 = vld [vmem:[%s11] sm:$0xf]
        %v1834 = vld [vmem:[%s11 + $0x4] sm:$0xf]
        %v1835 = vld [vmem:[%s11 + $0x8] sm:$0xf]
        %v1836 = vld [vmem:[%s11 + $0xc] sm:$0xf]
        %v1837 = vld [vmem:[%s11 + $0x10] sm:$0xf]
        %v1838 = vld [vmem:[%s11 + $0x14] sm:$0xf]
        %v1839 = vld [vmem:[%s11 + $0x18] sm:$0xf]
        %v1840 = vld [vmem:[%s11 + $0x1c] sm:$0xf]
        %v1841 = vld [vmem:[%s11 + $0x20] sm:$0xf]
        %v1842 = vld [vmem:[%s11 + $0x24] sm:$0xf]
        %v1843 = vld [vmem:[%s11 + $0x28] sm:$0xf]
        %v1844 = vld [vmem:[%s11 + $0x2c] sm:$0xf]
        %v1845 = vld [vmem:[%s11 + $0x30] sm:$0xf]
        %v1846 = vld [vmem:[%s11 + $0x34] sm:$0xf]
        %v1847 = vld [vmem:[%s11 + $0x38] sm:$0xf]
        %v1848 = vld [vmem:[%s11 + $0x3c] sm:$0xf]
        %v1865 = vunpack.c.l.b16 %v1833
        %v1866 = vunpack.c.l.b16 %v1834
        %v1867 = vunpack.c.l.b16 %v1835
        %v1868 = vunpack.c.l.b16 %v1836
        %v1869 = vunpack.c.l.b16 %v1837
        %v1870 = vunpack.c.l.b16 %v1838
        %v1871 = vunpack.c.l.b16 %v1839
        %v1872 = vunpack.c.l.b16 %v1840
        %v1873 = vunpack.c.l.b16 %v1841
        %v1874 = vunpack.c.l.b16 %v1842
        %v1875 = vunpack.c.l.b16 %v1843
        %v1876 = vunpack.c.l.b16 %v1844
        %v1877 = vunpack.c.l.b16 %v1845
        %v1878 = vunpack.c.l.b16 %v1846
        %v1879 = vunpack.c.l.b16 %v1847
        %v1880 = vunpack.c.l.b16 %v1848
        %v1881 = vpack.c.b16 %v1866, %v1865
        %v1882 = vpack.c.b16 %v1868, %v1867
        %v1883 = vpack.c.b16 %v1870, %v1869
        %v1884 = vpack.c.b16 %v1872, %v1871
        %v1885 = vpack.c.b16 %v1874, %v1873
        %v1886 = vpack.c.b16 %v1876, %v1875
        %v1887 = vpack.c.b16 %v1878, %v1877
        %v1888 = vpack.c.b16 %v1880, %v1879
        %1897 = vmatpush.bf16.msra.mxu0 %v1888
        %1898 = vmatpush.bf16.msra.mxu0 %v1887
        %1899 = vmatpush.bf16.msra.mxu0 %v1886
        %1900 = vmatpush.bf16.msra.mxu0 %v1885
        %1901 = vmatpush.bf16.msra.mxu0 %v1884
        %1902 = vmatpush.bf16.msra.mxu0 %v1883
        %1903 = vmatpush.bf16.msra.mxu0 %v1882
        %1904 = vmatpush.bf16.msra.mxu0 %v1881
        %1905 = vmatmul.bf16.gmra.mxu0 %v1825
        %v1906 = vpop.f32.mrf.mxu0
        %v1907 = vadd.f32 0.0, %v1906
        %v1908 = vpop.f32.mrf.mxu0
        %v1909 = vadd.f32 0.0, %v1908
        %1910 = vmatmul.bf16.gmra.mxu0 %v1826
        %v1911 = vpop.f32.mrf.mxu0
        %v1912 = vadd.f32 0.0, %v1911
        %v1913 = vpop.f32.mrf.mxu0
        %v1914 = vadd.f32 0.0, %v1913
        %1915 = vmatmul.bf16.gmra.mxu0 %v1827
        %v1916 = vpop.f32.mrf.mxu0
        %v1917 = vadd.f32 0.0, %v1916
        %v1918 = vpop.f32.mrf.mxu0
        %v1919 = vadd.f32 0.0, %v1918
        %1920 = vmatmul.bf16.gmra.mxu0 %v1828
        %v1921 = vpop.f32.mrf.mxu0
        %v1922 = vadd.f32 0.0, %v1921
        %v1923 = vpop.f32.mrf.mxu0
        %v1924 = vadd.f32 0.0, %v1923
        %1925 = vmatmul.bf16.gmra.mxu0 %v1829
        %v1926 = vpop.f32.mrf.mxu0
        %v1927 = vadd.f32 0.0, %v1926
        %v1928 = vpop.f32.mrf.mxu0
        %v1929 = vadd.f32 0.0, %v1928
        %1930 = vmatmul.bf16.gmra.mxu0 %v1830
        %v1931 = vpop.f32.mrf.mxu0
        %v1932 = vadd.f32 0.0, %v1931
        %v1933 = vpop.f32.mrf.mxu0
        %v1934 = vadd.f32 0.0, %v1933
        %1935 = vmatmul.bf16.gmra.mxu0 %v1831
        %v1936 = vpop.f32.mrf.mxu0
        %v1937 = vadd.f32 0.0, %v1936
        %v1938 = vpop.f32.mrf.mxu0
        %v1939 = vadd.f32 0.0, %v1938
        %1940 = vmatmul.bf16.gmra.mxu0 %v1832
        %v1941 = vpop.f32.mrf.mxu0
        %v1942 = vadd.f32 0.0, %v1941
        %v1943 = vpop.f32.mrf.mxu0
        %v1944 = vadd.f32 0.0, %v1943
        %1945 = vdwg.mxu0
        %v1946 = vpack.c.bf16 %v1907, %v1907
        %v1947 = vpack.c.bf16 %v1909, %v1909
        %v1948 = vpack.c.bf16 %v1912, %v1912
        %v1949 = vpack.c.bf16 %v1914, %v1914
        %v1950 = vpack.c.bf16 %v1917, %v1917
        %v1951 = vpack.c.bf16 %v1919, %v1919
        %v1952 = vpack.c.bf16 %v1922, %v1922
        %v1953 = vpack.c.bf16 %v1924, %v1924
        %v1954 = vpack.c.bf16 %v1927, %v1927
        %v1955 = vpack.c.bf16 %v1929, %v1929
        %v1956 = vpack.c.bf16 %v1932, %v1932
        %v1957 = vpack.c.bf16 %v1934, %v1934
        %v1958 = vpack.c.bf16 %v1937, %v1937
        %v1959 = vpack.c.bf16 %v1939, %v1939
        %v1960 = vpack.c.bf16 %v1942, %v1942
        %v1961 = vpack.c.bf16 %v1944, %v1944
        %v1962 = vld [vmem:[%s12] sm:$0x1]
        %v1964 = vpack.i.b16 %v1962, %v1962
        %v1966 = vperm.slane %v1964, 0
        %v1967 = vunpack.c.l.bf16 %v1946
        %v1968 = vunpack.c.l.bf16 %v1947
        %v1969 = vunpack.c.l.bf16 %v1948
        %v1970 = vunpack.c.l.bf16 %v1949
        %v1971 = vunpack.c.l.bf16 %v1950
        %v1972 = vunpack.c.l.bf16 %v1951
        %v1973 = vunpack.c.l.bf16 %v1952
        %v1974 = vunpack.c.l.bf16 %v1953
        %v1975 = vunpack.c.l.bf16 %v1954
        %v1976 = vunpack.c.l.bf16 %v1955
        %v1977 = vunpack.c.l.bf16 %v1956
        %v1978 = vunpack.c.l.bf16 %v1957
        %v1979 = vunpack.c.l.bf16 %v1958
        %v1980 = vunpack.c.l.bf16 %v1959
        %v1981 = vunpack.c.l.bf16 %v1960
        %v1982 = vunpack.c.l.bf16 %v1961
        %v1983 = vunpack.c.l.bf16 %v1966
        %v1984 = vadd.f32 %v1967, %v1983
        %v1985 = vadd.f32 %v1968, %v1983
        %v1986 = vadd.f32 %v1969, %v1983
        %v1987 = vadd.f32 %v1970, %v1983
        %v1988 = vadd.f32 %v1971, %v1983
        %v1989 = vadd.f32 %v1972, %v1983
        %v1990 = vadd.f32 %v1973, %v1983
        %v1991 = vadd.f32 %v1974, %v1983
        %v1992 = vadd.f32 %v1975, %v1983
        %v1993 = vadd.f32 %v1976, %v1983
        %v1994 = vadd.f32 %v1977, %v1983
        %v1995 = vadd.f32 %v1978, %v1983
        %v1996 = vadd.f32 %v1979, %v1983
        %v1997 = vadd.f32 %v1980, %v1983
        %v1998 = vadd.f32 %v1981, %v1983
        %v1999 = vadd.f32 %v1982, %v1983
        %v2000 = vpack.c.bf16 %v1984, %v1984
        %v2001 = vpack.c.bf16 %v1985, %v1985
        %v2002 = vpack.c.bf16 %v1986, %v1986
        %v2003 = vpack.c.bf16 %v1987, %v1987
        %v2004 = vpack.c.bf16 %v1988, %v1988
        %v2005 = vpack.c.bf16 %v1989, %v1989
        %v2006 = vpack.c.bf16 %v1990, %v1990
        %v2007 = vpack.c.bf16 %v1991, %v1991
        %v2008 = vpack.c.bf16 %v1992, %v1992
        %v2009 = vpack.c.bf16 %v1993, %v1993
        %v2010 = vpack.c.bf16 %v1994, %v1994
        %v2011 = vpack.c.bf16 %v1995, %v1995
        %v2012 = vpack.c.bf16 %v1996, %v1996
        %v2013 = vpack.c.bf16 %v1997, %v1997
        %v2014 = vpack.c.bf16 %v1998, %v1998
        %v2015 = vpack.c.bf16 %v1999, %v1999
        %2016 = vst [vmem:[%s474] sm:$0xf] %v2000
        %2017 = vst [vmem:[%s474 + $0x4] sm:$0xf] %v2001
        %2018 = vst [vmem:[%s474 + $0x8] sm:$0xf] %v2002
        %2019 = vst [vmem:[%s474 + $0xc] sm:$0xf] %v2003
        %2020 = vst [vmem:[%s474 + $0x10] sm:$0xf] %v2004
        %2021 = vst [vmem:[%s474 + $0x14] sm:$0xf] %v2005
        %2022 = vst [vmem:[%s474 + $0x18] sm:$0xf] %v2006
        %2023 = vst [vmem:[%s474 + $0x1c] sm:$0xf] %v2007
        %2024 = vst [vmem:[%s474 + $0x20] sm:$0xf] %v2008
        %2025 = vst [vmem:[%s474 + $0x24] sm:$0xf] %v2009
        %2026 = vst [vmem:[%s474 + $0x28] sm:$0xf] %v2010
        %2027 = vst [vmem:[%s474 + $0x2c] sm:$0xf] %v2011
        %2028 = vst [vmem:[%s474 + $0x30] sm:$0xf] %v2012
        %2029 = vst [vmem:[%s474 + $0x34] sm:$0xf] %v2013
        %2030 = vst [vmem:[%s474 + $0x38] sm:$0xf] %v2014
        %2031 = vst [vmem:[%s474 + $0x3c] sm:$0xf] %v2015
        %s2032 = smul.u32 16, %s26
        %p2033 = scmp.lt.s32.totalorder %s2032, 31
        %s2034 = scalar_select %p2033, %s2032, 31
        %s2035 = smul.addr %s2034, 4
        %s2036 = scalar_lea.vmem %s13, %s2035
        // Predicated region
        $region81: #{pclass_forward.1} parent=71 // pred_check
          %p2037 = pneg %p322
        $region82: #{pclass_forward.1} parent=71 // pred_check_branch
          %2039 = sbr.rel (%p2037) target = $region84
        $region83: #{pclass_forward.1} parent=71 // pred_region
          %s2040 = smul.u32 16, %s26
        $region84: #{pclass_forward.1} parent=71 // pred_fallthru
          _
      $region72: #{pclass_forward.1} parent=5 // pred_fallthru
        _
      %p2041 = scmp.le.s32.totalorder 2, %s21
      // Predicated region
      $region85: #{pclass_forward.1} parent=5 // pred_check
        %p2042 = pneg %p2041
      $region86: #{pclass_forward.1} parent=5 // pred_check_branch
        %2044 = sbr.rel (%p2042) target = $region88
      $region87: #{pclass_forward.1} parent=5 // pred_region
        %s2045 = ssub.s32 %s21, 2
        // Predicated region
        $region89: #{pclass_forward.1} parent=87 // pred_check
          %p2046 = pneg %p328
        $region90: #{pclass_forward.1} parent=87 // pred_check_branch
          %2048 = sbr.rel (%p2046) target = $region92
        $region91: #{pclass_forward.1} parent=87 // pred_region
          %s2049 = smul.u32 16, %s27
          %p2050 = scmp.lt.s32.totalorder %s2049, 31
          %s2051 = scalar_select %p2050, %s2049, 31
          %s2052 = smul.addr %s2051, 4
          %s2053 = scalar_lea.vmem %s13, %s2052
        $region92: #{pclass_forward.1} parent=87 // pred_fallthru
          _
      $region88: #{pclass_forward.1} parent=5 // pred_fallthru
        _
    $region6: #{pclass_forward.1} parent=1 // loop_footer
      %s25 = sadd.s32 1, %s21
    $region7: #{pclass_forward.1} parent=1 // loop_footer_branch
      %20 = sbr.rel target = $region3
    $region8: #{pclass_forward.1} parent=1 // loop_exit
      _
    %2054 = vsyncpa [#allocation3], 1
    %s2055 = scalar_lea.sflag [#allocation3], 1
    %2056 = vsyncpa %s2055, 1
    %2057 = vsyncpa [#allocation5], 1

</llo_original>
